<compile_context>
chip_gen: v7x
topology: tpu7x:2x2x1
jax: 0.10.0
libtpu: 0.0.40
codegen_flags: <defaults>
</compile_context>

<pallas_src>
import numpy as np

import jax
import jax.numpy as jnp
from jax.experimental import pallas as pl
from jax.experimental.pallas import tpu as pltpu


def _round_up(x, n):
    return ((x + n - 1) // n) * n


def prepare_params(params):
    """One-time preprocessing of PyTorch-layout ConvTranspose2d parameters.

    For each layer: flip the kernel spatially, transpose to (kH, kW, Cout, Cin),
    zero-pad both channel dims up to a multiple of 8 (sublane tile), and pad
    the bias to (Cout_pad, 1).  Hoisted out of the per-forward-call path.
    """
    prepped = {}
    for i in (1, 2, 3):
        w = jnp.asarray(params[f"w{i}"], jnp.float32)    # (Cin, Cout, kH, kW)
        b = jnp.asarray(params[f"b{i}"], jnp.float32)    # (Cout,)
        cin, cout, kh, kw = w.shape
        cin_p, cout_p = _round_up(cin, 8), _round_up(cout, 8)
        wf = jnp.transpose(w[:, :, ::-1, ::-1], (2, 3, 1, 0))   # (kH,kW,Cout,Cin)
        wp = jnp.zeros((kh, kw, cout_p, cin_p), jnp.float32)
        wp = wp.at[:, :, :cout, :cin].set(wf)
        bp = jnp.zeros((cout_p, 1), jnp.float32).at[:cout, 0].set(b)
        prepped[f"w{i}"] = wp
        prepped[f"b{i}"] = bp
    return prepped


def deconv_layer_pallas(x_nchw, p):
    """Fused forward pass (ReLU activations).  x_nchw: (N, C3, H, W) float32."""
    x = x_nchw.astype(jnp.float32)
    N, C3, H, W = x.shape
    w1, b1, w2, b2, w3, b3 = p["w1"], p["b1"], p["w2"], p["b2"], p["w3"], p["b3"]

    k1, k2, k3 = w1.shape[0], w2.shape[0], w3.shape[0]
    g1, g2, g3 = k1 - 1, k2 - 1, k3 - 1
    M = g1 + g2 + g3                      # top/left zero margin on the canvas
    R = max(g1, g2, g3)                   # bottom/right zero margin
    Hc, Wc = M + H + R, M + W + R         # canvas spatial extent
    Lc = (Hc + 1) * Wc                    # flat canvas length (+1 slack row:
                                          # shifted flat reads overrun last row)

    # Per-layer output-region geometry on the canvas (each layer's output grows
    # toward the top-left by k-1; the bottom/right data edge stays fixed).
    cy1, Ho1, Wo1 = M - g1,       H + g1,       W + g1
    cy2, Ho2, Wo2 = M - g1 - g2,  H + g1 + g2,  W + g1 + g2
    cy3, Ho3, Wo3 = 0,            H + M,        W + M
    base1, L1 = cy1 * Wc + cy1, Ho1 * Wc
    base2, L2 = cy2 * Wc + cy2, Ho2 * Wc
    base3, L3 = cy3 * Wc + cy3, Ho3 * Wc

    ci1, co1 = w1.shape[3], w1.shape[2]
    ci2, co2 = w2.shape[3], w2.shape[2]
    ci3, co3 = w3.shape[3], w3.shape[2]
    CMAX = max(ci1, co1, ci2, co2, ci3, co3)

    # 0/1 masks for the flat layout: a contiguous flat slice of length Ho*Wc
    # wraps rows at width Wc, so columns >= Wo carry junk and must be zeroed
    # before being written back as the next layer's (zero) padding.
    def _mask(Ho, Wo):
        m = np.zeros((Ho, Wc), np.float32)
        m[:, :Wo] = 1.0
        return jnp.asarray(m.reshape(1, Ho * Wc))

    m1, m2 = _mask(Ho1, Wo1), _mask(Ho2, Wo2)

    def kernel(x_ref, w1_ref, b1_ref, m1_ref, w2_ref, b2_ref, m2_ref,
               w3_ref, b3_ref, o_ref, can_a, can_b):
        zeros = jnp.zeros((CMAX, Lc), jnp.float32)
        can_a[...] = zeros
        can_b[...] = zeros

        # Place the un-padded NCHW image into canvas A's interior; the canvas'
        # zero margins ARE the conv-transpose "full" padding.
        for r in range(H):
            off = (M + r) * Wc + M
            can_a[0:C3, off:off + W] = x_ref[0, :, r, :]

        def conv(src, w_ref, b_ref, k, base, L, ci, co, relu):
            # Stride-1 conv of the zero-padded canvas with the flipped kernel.
            # Per tap: one contiguous lane-dense slice of the flat canvas and
            # one (co, ci) @ (ci, L) channel-contraction matmul.
            acc = jnp.zeros((co, L), jnp.float32)
            for kh in range(k):
                for kw in range(k):
                    st = base + kh * Wc + kw
                    acc = acc + jnp.dot(w_ref[kh, kw], src[0:ci, st:st + L],
                                        preferred_element_type=jnp.float32)
            acc = acc + b_ref[...]
            if relu:
                acc = jnp.maximum(acc, 0.0)
            return acc

        # Layer 1: ConvT(k=2) + ReLU,  canvas A -> canvas B.
        a1 = conv(can_a, w1_ref, b1_ref, k1, base1, L1, ci1, co1, relu=True)
        can_b[0:co1, base1:base1 + L1] = a1 * m1_ref[...]

        # Layer 2: ConvT(k=3) + ReLU,  canvas B -> canvas A (re-zeroed).
        can_a[...] = zeros
        a2 = conv(can_b, w2_ref, b2_ref, k2, base2, L2, ci2, co2, relu=True)
        can_a[0:co2, base2:base2 + L2] = a2 * m2_ref[...]

        # Layer 3: ConvT(k=3), canvas A -> lane-dense flat output row (junk
        # columns are dropped by the wrapper's final slice).
        a3 = conv(can_a, w3_ref, b3_ref, k3, base3, L3, ci3, co3, relu=False)
        o_ref[0] = a3[0:1, :]

    out_flat = pl.pallas_call(
        kernel,
        out_shape=jax.ShapeDtypeStruct((N, 1, L3), jnp.float32),
        grid=(N,),
        in_specs=[
            pl.BlockSpec((1, C3, H, W), lambda n: (n, 0, 0, 0)),
            pl.BlockSpec(w1.shape, lambda n: (0, 0, 0, 0)),
            pl.BlockSpec(b1.shape, lambda n: (0, 0)),
            pl.BlockSpec(m1.shape, lambda n: (0, 0)),
            pl.BlockSpec(w2.shape, lambda n: (0, 0, 0, 0)),
            pl.BlockSpec(b2.shape, lambda n: (0, 0)),
            pl.BlockSpec(m2.shape, lambda n: (0, 0)),
            pl.BlockSpec(w3.shape, lambda n: (0, 0, 0, 0)),
            pl.BlockSpec(b3.shape, lambda n: (0, 0)),
        ],
        out_specs=pl.BlockSpec((1, 1, L3), lambda n: (n, 0, 0)),
        scratch_shapes=[pltpu.VMEM((CMAX, Lc), jnp.float32),
                        pltpu.VMEM((CMAX, Lc), jnp.float32)],
        compiler_params=pltpu.CompilerParams(
            dimension_semantics=("parallel",)),   # v7x: the 2 TCs split the batch
    )(x, w1, b1, m1, w2, b2, m2, w3, b3)

    # Un-flatten the canvas rows and drop the right-margin columns -> NCHW.
    return out_flat.reshape(N, 1, Ho3, Wc)[:, :, :, :Wo3]


# ---- pure-JAX reference (independent derivation: scatter form of conv-T) ----
def _conv_transpose_ref(x_nchw, w, b):
    N, Cin, H, W = x_nchw.shape
    _, Cout, kH, kW = w.shape
    out = jnp.zeros((N, Cout, H + kH - 1, W + kW - 1), jnp.float32)
    for kh in range(kH):
        for kw in range(kW):
            out = out.at[:, :, kh:kh + H, kw:kw + W].add(
                jnp.einsum("nchw,cd->ndhw", x_nchw, w[:, :, kh, kw]))
    return out + b[None, :, None, None]


def _deconv_ref(x, p):
    x = jax.nn.relu(_conv_transpose_ref(x, p["w1"], p["b1"]))
    x = jax.nn.relu(_conv_transpose_ref(x, p["w2"], p["b2"]))
    return _conv_transpose_ref(x, p["w3"], p["b3"])


def init_params(key, n_k1, n_k2, n_k3):
    """Deterministic parameter init (PyTorch-style uniform bounds)."""
    ks = jax.random.split(key, 6)

    def u(k, shape, fan_in):
        bound = 1.0 / jnp.sqrt(fan_in)
        return jax.random.uniform(k, shape, jnp.float32, -bound, bound)

    # PyTorch ConvTranspose2d weight layout: (in_ch, out_ch, kH, kW)
    return {
        "w1": u(ks[0], (n_k3, n_k2, 2, 2), n_k3 * 2 * 2),
        "b1": u(ks[1], (n_k2,), n_k3 * 2 * 2),
        "w2": u(ks[2], (n_k2, n_k1, 3, 3), n_k2 * 3 * 3),
        "b2": u(ks[3], (n_k1,), n_k2 * 3 * 3),
        "w3": u(ks[4], (n_k1, 1, 3, 3), n_k1 * 3 * 3),
        "b3": u(ks[5], (1,), n_k1 * 3 * 3),
    }


if __name__ == "__main__":
    key = jax.random.PRNGKey(0)
    k_x, k_p = jax.random.split(key)

    n_kernels_1, n_kernels_2, n_kernels_3 = 8, 8, 4
    N, H, W = 2, 8, 8

    x = jax.random.normal(k_x, (N, n_kernels_3, H, W), jnp.float32)   # NCHW
    params = init_params(k_p, n_kernels_1, n_kernels_2, n_kernels_3)
    prepped = prepare_params(params)          # one-time, outside the hot path

    fwd = jax.jit(deconv_layer_pallas)
    out = jax.block_until_ready(fwd(x, prepped))
    ref = jax.block_until_ready(_deconv_ref(x, params))

    assert out.shape == (N, 1, H + 1 + 2 + 2, W + 1 + 2 + 2), out.shape
    assert jnp.allclose(out, ref, atol=1e-4, rtol=1e-4), "mismatch vs reference"

    print("KERNEL_OK")
</pallas_src>

<mosaic_0001>
module attributes {stable_mosaic.version = 11 : i64} {
  func.func @kernel(%arg0: i32, %arg1: memref<1x4x8x8xf32, #tpu.memory_space<vmem>>, %arg2: memref<2x2x8x8xf32, #tpu.memory_space<vmem>>, %arg3: memref<8x1xf32, #tpu.memory_space<vmem>>, %arg4: memref<1x135xf32, #tpu.memory_space<vmem>>, %arg5: memref<3x3x8x8xf32, #tpu.memory_space<vmem>>, %arg6: memref<8x1xf32, #tpu.memory_space<vmem>>, %arg7: memref<1x165xf32, #tpu.memory_space<vmem>>, %arg8: memref<3x3x8x8xf32, #tpu.memory_space<vmem>>, %arg9: memref<8x1xf32, #tpu.memory_space<vmem>>, %arg10: memref<1x1x195xf32, #tpu.memory_space<vmem>>, %arg11: memref<8x240xf32, #tpu.memory_space<vmem>>, %arg12: memref<8x240xf32, #tpu.memory_space<vmem>>) attributes {dimension_semantics = [#tpu.dimension_semantics<parallel>], iteration_bounds = array<i64: 2>, scalar_prefetch = 0 : i64, scratch_operands = 2 : i64, tpu.core_type = #tpu.core_type<tc>, window_params = [{transform_indices = @transform_0, window_bounds = array<i64: 1, 4, 8, 8>}, {pipeline_mode = #tpu.pipeline_mode<synchronous>, transform_indices = @transform_1, window_bounds = array<i64: 2, 2, 8, 8>}, {pipeline_mode = #tpu.pipeline_mode<synchronous>, transform_indices = @transform_2, window_bounds = array<i64: 8, 1>}, {pipeline_mode = #tpu.pipeline_mode<synchronous>, transform_indices = @transform_3, window_bounds = array<i64: 1, 135>}, {pipeline_mode = #tpu.pipeline_mode<synchronous>, transform_indices = @transform_4, window_bounds = array<i64: 3, 3, 8, 8>}, {pipeline_mode = #tpu.pipeline_mode<synchronous>, transform_indices = @transform_5, window_bounds = array<i64: 8, 1>}, {pipeline_mode = #tpu.pipeline_mode<synchronous>, transform_indices = @transform_6, window_bounds = array<i64: 1, 165>}, {pipeline_mode = #tpu.pipeline_mode<synchronous>, transform_indices = @transform_7, window_bounds = array<i64: 3, 3, 8, 8>}, {pipeline_mode = #tpu.pipeline_mode<synchronous>, transform_indices = @transform_8, window_bounds = array<i64: 8, 1>}, {transform_indices = @transform_9, window_bounds = array<i64: 1, 1, 195>}]} {
    %cst = arith.constant 0.000000e+00 : f32
    %0 = vector.broadcast %cst : f32 to vector<8x240xf32>
    %c0 = arith.constant 0 : index
    %c0_0 = arith.constant 0 : index
    %1 = vector.load %arg11[%c0, %c0_0] : memref<8x240xf32, #tpu.memory_space<vmem>>, vector<8x240xf32>
    tpu.vector_store %arg11[%c0, %c0_0], %0 {strides = array<i32>} : memref<8x240xf32, #tpu.memory_space<vmem>>, vector<8x240xf32>,
    %c0_1 = arith.constant 0 : index
    %c0_2 = arith.constant 0 : index
    %2 = vector.load %arg12[%c0_1, %c0_2] : memref<8x240xf32, #tpu.memory_space<vmem>>, vector<8x240xf32>
    tpu.vector_store %arg12[%c0_1, %c0_2], %0 {strides = array<i32>} : memref<8x240xf32, #tpu.memory_space<vmem>>, vector<8x240xf32>,
    %c0_3 = arith.constant 0 : index
    %c0_4 = arith.constant 0 : index
    %c0_5 = arith.constant 0 : index
    %c0_6 = arith.constant 0 : index
    %3 = vector.load %arg1[%c0_3, %c0_4, %c0_5, %c0_6] : memref<1x4x8x8xf32, #tpu.memory_space<vmem>>, vector<1x4x1x8xf32>
    %4 = vector.shape_cast %3 : vector<1x4x1x8xf32> to vector<4x8xf32>
    %c0_7 = arith.constant 0 : index
    %c80 = arith.constant 80 : index
    %5 = vector.load %arg11[%c0_7, %c80] : memref<8x240xf32, #tpu.memory_space<vmem>>, vector<4x8xf32>
    tpu.vector_store %arg11[%c0_7, %c80], %4 {strides = array<i32>} : memref<8x240xf32, #tpu.memory_space<vmem>>, vector<4x8xf32>,
    %c0_8 = arith.constant 0 : index
    %c0_9 = arith.constant 0 : index
    %c1 = arith.constant 1 : index
    %c0_10 = arith.constant 0 : index
    %6 = vector.load %arg1[%c0_8, %c0_9, %c1, %c0_10] : memref<1x4x8x8xf32, #tpu.memory_space<vmem>>, vector<1x4x1x8xf32>
    %7 = vector.shape_cast %6 : vector<1x4x1x8xf32> to vector<4x8xf32>
    %c0_11 = arith.constant 0 : index
    %c95 = arith.constant 95 : index
    %8 = vector.load %arg11[%c0_11, %c95] : memref<8x240xf32, #tpu.memory_space<vmem>>, vector<4x8xf32>
    tpu.vector_store %arg11[%c0_11, %c95], %7 {strides = array<i32>} : memref<8x240xf32, #tpu.memory_space<vmem>>, vector<4x8xf32>,
    %c0_12 = arith.constant 0 : index
    %c0_13 = arith.constant 0 : index
    %c2 = arith.constant 2 : index
    %c0_14 = arith.constant 0 : index
    %9 = vector.load %arg1[%c0_12, %c0_13, %c2, %c0_14] : memref<1x4x8x8xf32, #tpu.memory_space<vmem>>, vector<1x4x1x8xf32>
    %10 = vector.shape_cast %9 : vector<1x4x1x8xf32> to vector<4x8xf32>
    %c0_15 = arith.constant 0 : index
    %c110 = arith.constant 110 : index
    %11 = vector.load %arg11[%c0_15, %c110] : memref<8x240xf32, #tpu.memory_space<vmem>>, vector<4x8xf32>
    tpu.vector_store %arg11[%c0_15, %c110], %10 {strides = array<i32>} : memref<8x240xf32, #tpu.memory_space<vmem>>, vector<4x8xf32>,
    %c0_16 = arith.constant 0 : index
    %c0_17 = arith.constant 0 : index
    %c3 = arith.constant 3 : index
    %c0_18 = arith.constant 0 : index
    %12 = vector.load %arg1[%c0_16, %c0_17, %c3, %c0_18] : memref<1x4x8x8xf32, #tpu.memory_space<vmem>>, vector<1x4x1x8xf32>
    %13 = vector.shape_cast %12 : vector<1x4x1x8xf32> to vector<4x8xf32>
    %c0_19 = arith.constant 0 : index
    %c125 = arith.constant 125 : index
    %14 = vector.load %arg11[%c0_19, %c125] : memref<8x240xf32, #tpu.memory_space<vmem>>, vector<4x8xf32>
    tpu.vector_store %arg11[%c0_19, %c125], %13 {strides = array<i32>} : memref<8x240xf32, #tpu.memory_space<vmem>>, vector<4x8xf32>,
    %c0_20 = arith.constant 0 : index
    %c0_21 = arith.constant 0 : index
    %c4 = arith.constant 4 : index
    %c0_22 = arith.constant 0 : index
    %15 = vector.load %arg1[%c0_20, %c0_21, %c4, %c0_22] : memref<1x4x8x8xf32, #tpu.memory_space<vmem>>, vector<1x4x1x8xf32>
    %16 = vector.shape_cast %15 : vector<1x4x1x8xf32> to vector<4x8xf32>
    %c0_23 = arith.constant 0 : index
    %c140 = arith.constant 140 : index
    %17 = vector.load %arg11[%c0_23, %c140] : memref<8x240xf32, #tpu.memory_space<vmem>>, vector<4x8xf32>
    tpu.vector_store %arg11[%c0_23, %c140], %16 {strides = array<i32>} : memref<8x240xf32, #tpu.memory_space<vmem>>, vector<4x8xf32>,
    %c0_24 = arith.constant 0 : index
    %c0_25 = arith.constant 0 : index
    %c5 = arith.constant 5 : index
    %c0_26 = arith.constant 0 : index
    %18 = vector.load %arg1[%c0_24, %c0_25, %c5, %c0_26] : memref<1x4x8x8xf32, #tpu.memory_space<vmem>>, vector<1x4x1x8xf32>
    %19 = vector.shape_cast %18 : vector<1x4x1x8xf32> to vector<4x8xf32>
    %c0_27 = arith.constant 0 : index
    %c155 = arith.constant 155 : index
    %20 = vector.load %arg11[%c0_27, %c155] : memref<8x240xf32, #tpu.memory_space<vmem>>, vector<4x8xf32>
    tpu.vector_store %arg11[%c0_27, %c155], %19 {strides = array<i32>} : memref<8x240xf32, #tpu.memory_space<vmem>>, vector<4x8xf32>,
    %c0_28 = arith.constant 0 : index
    %c0_29 = arith.constant 0 : index
    %c6 = arith.constant 6 : index
    %c0_30 = arith.constant 0 : index
    %21 = vector.load %arg1[%c0_28, %c0_29, %c6, %c0_30] : memref<1x4x8x8xf32, #tpu.memory_space<vmem>>, vector<1x4x1x8xf32>
    %22 = vector.shape_cast %21 : vector<1x4x1x8xf32> to vector<4x8xf32>
    %c0_31 = arith.constant 0 : index
    %c170 = arith.constant 170 : index
    %23 = vector.load %arg11[%c0_31, %c170] : memref<8x240xf32, #tpu.memory_space<vmem>>, vector<4x8xf32>
    tpu.vector_store %arg11[%c0_31, %c170], %22 {strides = array<i32>} : memref<8x240xf32, #tpu.memory_space<vmem>>, vector<4x8xf32>,
    %c0_32 = arith.constant 0 : index
    %c0_33 = arith.constant 0 : index
    %c7 = arith.constant 7 : index
    %c0_34 = arith.constant 0 : index
    %24 = vector.load %arg1[%c0_32, %c0_33, %c7, %c0_34] : memref<1x4x8x8xf32, #tpu.memory_space<vmem>>, vector<1x4x1x8xf32>
    %25 = vector.shape_cast %24 : vector<1x4x1x8xf32> to vector<4x8xf32>
    %c0_35 = arith.constant 0 : index
    %c185 = arith.constant 185 : index
    %26 = vector.load %arg11[%c0_35, %c185] : memref<8x240xf32, #tpu.memory_space<vmem>>, vector<4x8xf32>
    tpu.vector_store %arg11[%c0_35, %c185], %25 {strides = array<i32>} : memref<8x240xf32, #tpu.memory_space<vmem>>, vector<4x8xf32>,
    %cst_36 = arith.constant 0.000000e+00 : f32
    %27 = vector.broadcast %cst_36 : f32 to vector<8x135xf32>
    %c0_37 = arith.constant 0 : index
    %c0_38 = arith.constant 0 : index
    %c0_39 = arith.constant 0 : index
    %c0_40 = arith.constant 0 : index
    %28 = vector.load %arg2[%c0_37, %c0_38, %c0_39, %c0_40] : memref<2x2x8x8xf32, #tpu.memory_space<vmem>>, vector<1x1x8x8xf32>
    %29 = vector.shape_cast %28 : vector<1x1x8x8xf32> to vector<8x8xf32>
    %c0_41 = arith.constant 0 : index
    %c64 = arith.constant 64 : index
    %30 = vector.load %arg11[%c0_41, %c64] : memref<8x240xf32, #tpu.memory_space<vmem>>, vector<8x135xf32>
    %cst_42 = arith.constant dense<0.000000e+00> : vector<8x135xf32>
    %31 = tpu.matmul %29, %30, %cst_42 {dimension_numbers = #tpu.dot_dimension_numbers<[1], [0], [0], [1], [0, 0, 1, 1], [], []>} : vector<8x8xf32>, vector<8x135xf32>, vector<8x135xf32> -> vector<8x135xf32>
    %32 = arith.addf %27, %31 : vector<8x135xf32>
    %c0_43 = arith.constant 0 : index
    %c1_44 = arith.constant 1 : index
    %c0_45 = arith.constant 0 : index
    %c0_46 = arith.constant 0 : index
    %33 = vector.load %arg2[%c0_43, %c1_44, %c0_45, %c0_46] : memref<2x2x8x8xf32, #tpu.memory_space<vmem>>, vector<1x1x8x8xf32>
    %34 = vector.shape_cast %33 : vector<1x1x8x8xf32> to vector<8x8xf32>
    %c0_47 = arith.constant 0 : index
    %c65 = arith.constant 65 : index
    %35 = vector.load %arg11[%c0_47, %c65] : memref<8x240xf32, #tpu.memory_space<vmem>>, vector<8x135xf32>
    %cst_48 = arith.constant dense<0.000000e+00> : vector<8x135xf32>
    %36 = tpu.matmul %34, %35, %cst_48 {dimension_numbers = #tpu.dot_dimension_numbers<[1], [0], [0], [1], [0, 0, 1, 1], [], []>} : vector<8x8xf32>, vector<8x135xf32>, vector<8x135xf32> -> vector<8x135xf32>
    %37 = arith.addf %32, %36 : vector<8x135xf32>
    %c1_49 = arith.constant 1 : index
    %c0_50 = arith.constant 0 : index
    %c0_51 = arith.constant 0 : index
    %c0_52 = arith.constant 0 : index
    %38 = vector.load %arg2[%c1_49, %c0_50, %c0_51, %c0_52] : memref<2x2x8x8xf32, #tpu.memory_space<vmem>>, vector<1x1x8x8xf32>
    %39 = vector.shape_cast %38 : vector<1x1x8x8xf32> to vector<8x8xf32>
    %c0_53 = arith.constant 0 : index
    %c79 = arith.constant 79 : index
    %40 = vector.load %arg11[%c0_53, %c79] : memref<8x240xf32, #tpu.memory_space<vmem>>, vector<8x135xf32>
    %cst_54 = arith.constant dense<0.000000e+00> : vector<8x135xf32>
    %41 = tpu.matmul %39, %40, %cst_54 {dimension_numbers = #tpu.dot_dimension_numbers<[1], [0], [0], [1], [0, 0, 1, 1], [], []>} : vector<8x8xf32>, vector<8x135xf32>, vector<8x135xf32> -> vector<8x135xf32>
    %42 = arith.addf %37, %41 : vector<8x135xf32>
    %c1_55 = arith.constant 1 : index
    %c1_56 = arith.constant 1 : index
    %c0_57 = arith.constant 0 : index
    %c0_58 = arith.constant 0 : index
    %43 = vector.load %arg2[%c1_55, %c1_56, %c0_57, %c0_58] : memref<2x2x8x8xf32, #tpu.memory_space<vmem>>, vector<1x1x8x8xf32>
    %44 = vector.shape_cast %43 : vector<1x1x8x8xf32> to vector<8x8xf32>
    %c0_59 = arith.constant 0 : index
    %c80_60 = arith.constant 80 : index
    %45 = vector.load %arg11[%c0_59, %c80_60] : memref<8x240xf32, #tpu.memory_space<vmem>>, vector<8x135xf32>
    %cst_61 = arith.constant dense<0.000000e+00> : vector<8x135xf32>
    %46 = tpu.matmul %44, %45, %cst_61 {dimension_numbers = #tpu.dot_dimension_numbers<[1], [0], [0], [1], [0, 0, 1, 1], [], []>} : vector<8x8xf32>, vector<8x135xf32>, vector<8x135xf32> -> vector<8x135xf32>
    %47 = arith.addf %42, %46 : vector<8x135xf32>
    %c0_62 = arith.constant 0 : index
    %c0_63 = arith.constant 0 : index
    %48 = vector.load %arg3[%c0_62, %c0_63] : memref<8x1xf32, #tpu.memory_space<vmem>>, vector<8x1xf32>
    %49 = vector.broadcast %48 : vector<8x1xf32> to vector<8x135xf32>
    %50 = arith.addf %47, %49 : vector<8x135xf32>
    %cst_64 = arith.constant 0.000000e+00 : f32
    %51 = vector.broadcast %cst_64 : f32 to vector<8x135xf32>
    %52 = arith.maximumf %50, %51 : vector<8x135xf32>
    %c0_65 = arith.constant 0 : index
    %c0_66 = arith.constant 0 : index
    %53 = vector.load %arg4[%c0_65, %c0_66] : memref<1x135xf32, #tpu.memory_space<vmem>>, vector<1x135xf32>
    %54 = vector.broadcast %53 : vector<1x135xf32> to vector<8x135xf32>
    %55 = arith.mulf %52, %54 : vector<8x135xf32>
    %c0_67 = arith.constant 0 : index
    %c64_68 = arith.constant 64 : index
    %56 = vector.load %arg12[%c0_67, %c64_68] : memref<8x240xf32, #tpu.memory_space<vmem>>, vector<8x135xf32>
    tpu.vector_store %arg12[%c0_67, %c64_68], %55 {strides = array<i32>} : memref<8x240xf32, #tpu.memory_space<vmem>>, vector<8x135xf32>,
    %c0_69 = arith.constant 0 : index
    %c0_70 = arith.constant 0 : index
    %57 = vector.load %arg11[%c0_69, %c0_70] : memref<8x240xf32, #tpu.memory_space<vmem>>, vector<8x240xf32>
    tpu.vector_store %arg11[%c0_69, %c0_70], %0 {strides = array<i32>} : memref<8x240xf32, #tpu.memory_space<vmem>>, vector<8x240xf32>,
    %cst_71 = arith.constant 0.000000e+00 : f32
    %58 = vector.broadcast %cst_71 : f32 to vector<8x165xf32>
    %c0_72 = arith.constant 0 : index
    %c0_73 = arith.constant 0 : index
    %c0_74 = arith.constant 0 : index
    %c0_75 = arith.constant 0 : index
    %59 = vector.load %arg5[%c0_72, %c0_73, %c0_74, %c0_75] : memref<3x3x8x8xf32, #tpu.memory_space<vmem>>, vector<1x1x8x8xf32>
    %60 = vector.shape_cast %59 : vector<1x1x8x8xf32> to vector<8x8xf32>
    %c0_76 = arith.constant 0 : index
    %c32 = arith.constant 32 : index
    %61 = vector.load %arg12[%c0_76, %c32] : memref<8x240xf32, #tpu.memory_space<vmem>>, vector<8x165xf32>
    %cst_77 = arith.constant dense<0.000000e+00> : vector<8x165xf32>
    %62 = tpu.matmul %60, %61, %cst_77 {dimension_numbers = #tpu.dot_dimension_numbers<[1], [0], [0], [1], [0, 0, 1, 1], [], []>} : vector<8x8xf32>, vector<8x165xf32>, vector<8x165xf32> -> vector<8x165xf32>
    %63 = arith.addf %58, %62 : vector<8x165xf32>
    %c0_78 = arith.constant 0 : index
    %c1_79 = arith.constant 1 : index
    %c0_80 = arith.constant 0 : index
    %c0_81 = arith.constant 0 : index
    %64 = vector.load %arg5[%c0_78, %c1_79, %c0_80, %c0_81] : memref<3x3x8x8xf32, #tpu.memory_space<vmem>>, vector<1x1x8x8xf32>
    %65 = vector.shape_cast %64 : vector<1x1x8x8xf32> to vector<8x8xf32>
    %c0_82 = arith.constant 0 : index
    %c33 = arith.constant 33 : index
    %66 = vector.load %arg12[%c0_82, %c33] : memref<8x240xf32, #tpu.memory_space<vmem>>, vector<8x165xf32>
    %cst_83 = arith.constant dense<0.000000e+00> : vector<8x165xf32>
    %67 = tpu.matmul %65, %66, %cst_83 {dimension_numbers = #tpu.dot_dimension_numbers<[1], [0], [0], [1], [0, 0, 1, 1], [], []>} : vector<8x8xf32>, vector<8x165xf32>, vector<8x165xf32> -> vector<8x165xf32>
    %68 = arith.addf %63, %67 : vector<8x165xf32>
    %c0_84 = arith.constant 0 : index
    %c2_85 = arith.constant 2 : index
    %c0_86 = arith.constant 0 : index
    %c0_87 = arith.constant 0 : index
    %69 = vector.load %arg5[%c0_84, %c2_85, %c0_86, %c0_87] : memref<3x3x8x8xf32, #tpu.memory_space<vmem>>, vector<1x1x8x8xf32>
    %70 = vector.shape_cast %69 : vector<1x1x8x8xf32> to vector<8x8xf32>
    %c0_88 = arith.constant 0 : index
    %c34 = arith.constant 34 : index
    %71 = vector.load %arg12[%c0_88, %c34] : memref<8x240xf32, #tpu.memory_space<vmem>>, vector<8x165xf32>
    %cst_89 = arith.constant dense<0.000000e+00> : vector<8x165xf32>
    %72 = tpu.matmul %70, %71, %cst_89 {dimension_numbers = #tpu.dot_dimension_numbers<[1], [0], [0], [1], [0, 0, 1, 1], [], []>} : vector<8x8xf32>, vector<8x165xf32>, vector<8x165xf32> -> vector<8x165xf32>
    %73 = arith.addf %68, %72 : vector<8x165xf32>
    %c1_90 = arith.constant 1 : index
    %c0_91 = arith.constant 0 : index
    %c0_92 = arith.constant 0 : index
    %c0_93 = arith.constant 0 : index
    %74 = vector.load %arg5[%c1_90, %c0_91, %c0_92, %c0_93] : memref<3x3x8x8xf32, #tpu.memory_space<vmem>>, vector<1x1x8x8xf32>
    %75 = vector.shape_cast %74 : vector<1x1x8x8xf32> to vector<8x8xf32>
    %c0_94 = arith.constant 0 : index
    %c47 = arith.constant 47 : index
    %76 = vector.load %arg12[%c0_94, %c47] : memref<8x240xf32, #tpu.memory_space<vmem>>, vector<8x165xf32>
    %cst_95 = arith.constant dense<0.000000e+00> : vector<8x165xf32>
    %77 = tpu.matmul %75, %76, %cst_95 {dimension_numbers = #tpu.dot_dimension_numbers<[1], [0], [0], [1], [0, 0, 1, 1], [], []>} : vector<8x8xf32>, vector<8x165xf32>, vector<8x165xf32> -> vector<8x165xf32>
    %78 = arith.addf %73, %77 : vector<8x165xf32>
    %c1_96 = arith.constant 1 : index
    %c1_97 = arith.constant 1 : index
    %c0_98 = arith.constant 0 : index
    %c0_99 = arith.constant 0 : index
    %79 = vector.load %arg5[%c1_96, %c1_97, %c0_98, %c0_99] : memref<3x3x8x8xf32, #tpu.memory_space<vmem>>, vector<1x1x8x8xf32>
    %80 = vector.shape_cast %79 : vector<1x1x8x8xf32> to vector<8x8xf32>
    %c0_100 = arith.constant 0 : index
    %c48 = arith.constant 48 : index
    %81 = vector.load %arg12[%c0_100, %c48] : memref<8x240xf32, #tpu.memory_space<vmem>>, vector<8x165xf32>
    %cst_101 = arith.constant dense<0.000000e+00> : vector<8x165xf32>
    %82 = tpu.matmul %80, %81, %cst_101 {dimension_numbers = #tpu.dot_dimension_numbers<[1], [0], [0], [1], [0, 0, 1, 1], [], []>} : vector<8x8xf32>, vector<8x165xf32>, vector<8x165xf32> -> vector<8x165xf32>
    %83 = arith.addf %78, %82 : vector<8x165xf32>
    %c1_102 = arith.constant 1 : index
    %c2_103 = arith.constant 2 : index
    %c0_104 = arith.constant 0 : index
    %c0_105 = arith.constant 0 : index
    %84 = vector.load %arg5[%c1_102, %c2_103, %c0_104, %c0_105] : memref<3x3x8x8xf32, #tpu.memory_space<vmem>>, vector<1x1x8x8xf32>
    %85 = vector.shape_cast %84 : vector<1x1x8x8xf32> to vector<8x8xf32>
    %c0_106 = arith.constant 0 : index
    %c49 = arith.constant 49 : index
    %86 = vector.load %arg12[%c0_106, %c49] : memref<8x240xf32, #tpu.memory_space<vmem>>, vector<8x165xf32>
    %cst_107 = arith.constant dense<0.000000e+00> : vector<8x165xf32>
    %87 = tpu.matmul %85, %86, %cst_107 {dimension_numbers = #tpu.dot_dimension_numbers<[1], [0], [0], [1], [0, 0, 1, 1], [], []>} : vector<8x8xf32>, vector<8x165xf32>, vector<8x165xf32> -> vector<8x165xf32>
    %88 = arith.addf %83, %87 : vector<8x165xf32>
    %c2_108 = arith.constant 2 : index
    %c0_109 = arith.constant 0 : index
    %c0_110 = arith.constant 0 : index
    %c0_111 = arith.constant 0 : index
    %89 = vector.load %arg5[%c2_108, %c0_109, %c0_110, %c0_111] : memref<3x3x8x8xf32, #tpu.memory_space<vmem>>, vector<1x1x8x8xf32>
    %90 = vector.shape_cast %89 : vector<1x1x8x8xf32> to vector<8x8xf32>
    %c0_112 = arith.constant 0 : index
    %c62 = arith.constant 62 : index
    %91 = vector.load %arg12[%c0_112, %c62] : memref<8x240xf32, #tpu.memory_space<vmem>>, vector<8x165xf32>
    %cst_113 = arith.constant dense<0.000000e+00> : vector<8x165xf32>
    %92 = tpu.matmul %90, %91, %cst_113 {dimension_numbers = #tpu.dot_dimension_numbers<[1], [0], [0], [1], [0, 0, 1, 1], [], []>} : vector<8x8xf32>, vector<8x165xf32>, vector<8x165xf32> -> vector<8x165xf32>
    %93 = arith.addf %88, %92 : vector<8x165xf32>
    %c2_114 = arith.constant 2 : index
    %c1_115 = arith.constant 1 : index
    %c0_116 = arith.constant 0 : index
    %c0_117 = arith.constant 0 : index
    %94 = vector.load %arg5[%c2_114, %c1_115, %c0_116, %c0_117] : memref<3x3x8x8xf32, #tpu.memory_space<vmem>>, vector<1x1x8x8xf32>
    %95 = vector.shape_cast %94 : vector<1x1x8x8xf32> to vector<8x8xf32>
    %c0_118 = arith.constant 0 : index
    %c63 = arith.constant 63 : index
    %96 = vector.load %arg12[%c0_118, %c63] : memref<8x240xf32, #tpu.memory_space<vmem>>, vector<8x165xf32>
    %cst_119 = arith.constant dense<0.000000e+00> : vector<8x165xf32>
    %97 = tpu.matmul %95, %96, %cst_119 {dimension_numbers = #tpu.dot_dimension_numbers<[1], [0], [0], [1], [0, 0, 1, 1], [], []>} : vector<8x8xf32>, vector<8x165xf32>, vector<8x165xf32> -> vector<8x165xf32>
    %98 = arith.addf %93, %97 : vector<8x165xf32>
    %c2_120 = arith.constant 2 : index
    %c2_121 = arith.constant 2 : index
    %c0_122 = arith.constant 0 : index
    %c0_123 = arith.constant 0 : index
    %99 = vector.load %arg5[%c2_120, %c2_121, %c0_122, %c0_123] : memref<3x3x8x8xf32, #tpu.memory_space<vmem>>, vector<1x1x8x8xf32>
    %100 = vector.shape_cast %99 : vector<1x1x8x8xf32> to vector<8x8xf32>
    %c0_124 = arith.constant 0 : index
    %c64_125 = arith.constant 64 : index
    %101 = vector.load %arg12[%c0_124, %c64_125] : memref<8x240xf32, #tpu.memory_space<vmem>>, vector<8x165xf32>
    %cst_126 = arith.constant dense<0.000000e+00> : vector<8x165xf32>
    %102 = tpu.matmul %100, %101, %cst_126 {dimension_numbers = #tpu.dot_dimension_numbers<[1], [0], [0], [1], [0, 0, 1, 1], [], []>} : vector<8x8xf32>, vector<8x165xf32>, vector<8x165xf32> -> vector<8x165xf32>
    %103 = arith.addf %98, %102 : vector<8x165xf32>
    %c0_127 = arith.constant 0 : index
    %c0_128 = arith.constant 0 : index
    %104 = vector.load %arg6[%c0_127, %c0_128] : memref<8x1xf32, #tpu.memory_space<vmem>>, vector<8x1xf32>
    %105 = vector.broadcast %104 : vector<8x1xf32> to vector<8x165xf32>
    %106 = arith.addf %103, %105 : vector<8x165xf32>
    %cst_129 = arith.constant 0.000000e+00 : f32
    %107 = vector.broadcast %cst_129 : f32 to vector<8x165xf32>
    %108 = arith.maximumf %106, %107 : vector<8x165xf32>
    %c0_130 = arith.constant 0 : index
    %c0_131 = arith.constant 0 : index
    %109 = vector.load %arg7[%c0_130, %c0_131] : memref<1x165xf32, #tpu.memory_space<vmem>>, vector<1x165xf32>
    %110 = vector.broadcast %109 : vector<1x165xf32> to vector<8x165xf32>
    %111 = arith.mulf %108, %110 : vector<8x165xf32>
    %c0_132 = arith.constant 0 : index
    %c32_133 = arith.constant 32 : index
    %112 = vector.load %arg11[%c0_132, %c32_133] : memref<8x240xf32, #tpu.memory_space<vmem>>, vector<8x165xf32>
    tpu.vector_store %arg11[%c0_132, %c32_133], %111 {strides = array<i32>} : memref<8x240xf32, #tpu.memory_space<vmem>>, vector<8x165xf32>,
    %cst_134 = arith.constant 0.000000e+00 : f32
    %113 = vector.broadcast %cst_134 : f32 to vector<8x195xf32>
    %c0_135 = arith.constant 0 : index
    %c0_136 = arith.constant 0 : index
    %c0_137 = arith.constant 0 : index
    %c0_138 = arith.constant 0 : index
    %114 = vector.load %arg8[%c0_135, %c0_136, %c0_137, %c0_138] : memref<3x3x8x8xf32, #tpu.memory_space<vmem>>, vector<1x1x8x8xf32>
    %115 = vector.shape_cast %114 : vector<1x1x8x8xf32> to vector<8x8xf32>
    %c0_139 = arith.constant 0 : index
    %c0_140 = arith.constant 0 : index
    %116 = vector.load %arg11[%c0_139, %c0_140] : memref<8x240xf32, #tpu.memory_space<vmem>>, vector<8x195xf32>
    %cst_141 = arith.constant dense<0.000000e+00> : vector<8x195xf32>
    %117 = tpu.matmul %115, %116, %cst_141 {dimension_numbers = #tpu.dot_dimension_numbers<[1], [0], [0], [1], [0, 0, 1, 1], [], []>} : vector<8x8xf32>, vector<8x195xf32>, vector<8x195xf32> -> vector<8x195xf32>
    %118 = arith.addf %113, %117 : vector<8x195xf32>
    %c0_142 = arith.constant 0 : index
    %c1_143 = arith.constant 1 : index
    %c0_144 = arith.constant 0 : index
    %c0_145 = arith.constant 0 : index
    %119 = vector.load %arg8[%c0_142, %c1_143, %c0_144, %c0_145] : memref<3x3x8x8xf32, #tpu.memory_space<vmem>>, vector<1x1x8x8xf32>
    %120 = vector.shape_cast %119 : vector<1x1x8x8xf32> to vector<8x8xf32>
    %c0_146 = arith.constant 0 : index
    %c1_147 = arith.constant 1 : index
    %121 = vector.load %arg11[%c0_146, %c1_147] : memref<8x240xf32, #tpu.memory_space<vmem>>, vector<8x195xf32>
    %cst_148 = arith.constant dense<0.000000e+00> : vector<8x195xf32>
    %122 = tpu.matmul %120, %121, %cst_148 {dimension_numbers = #tpu.dot_dimension_numbers<[1], [0], [0], [1], [0, 0, 1, 1], [], []>} : vector<8x8xf32>, vector<8x195xf32>, vector<8x195xf32> -> vector<8x195xf32>
    %123 = arith.addf %118, %122 : vector<8x195xf32>
    %c0_149 = arith.constant 0 : index
    %c2_150 = arith.constant 2 : index
    %c0_151 = arith.constant 0 : index
    %c0_152 = arith.constant 0 : index
    %124 = vector.load %arg8[%c0_149, %c2_150, %c0_151, %c0_152] : memref<3x3x8x8xf32, #tpu.memory_space<vmem>>, vector<1x1x8x8xf32>
    %125 = vector.shape_cast %124 : vector<1x1x8x8xf32> to vector<8x8xf32>
    %c0_153 = arith.constant 0 : index
    %c2_154 = arith.constant 2 : index
    %126 = vector.load %arg11[%c0_153, %c2_154] : memref<8x240xf32, #tpu.memory_space<vmem>>, vector<8x195xf32>
    %cst_155 = arith.constant dense<0.000000e+00> : vector<8x195xf32>
    %127 = tpu.matmul %125, %126, %cst_155 {dimension_numbers = #tpu.dot_dimension_numbers<[1], [0], [0], [1], [0, 0, 1, 1], [], []>} : vector<8x8xf32>, vector<8x195xf32>, vector<8x195xf32> -> vector<8x195xf32>
    %128 = arith.addf %123, %127 : vector<8x195xf32>
    %c1_156 = arith.constant 1 : index
    %c0_157 = arith.constant 0 : index
    %c0_158 = arith.constant 0 : index
    %c0_159 = arith.constant 0 : index
    %129 = vector.load %arg8[%c1_156, %c0_157, %c0_158, %c0_159] : memref<3x3x8x8xf32, #tpu.memory_space<vmem>>, vector<1x1x8x8xf32>
    %130 = vector.shape_cast %129 : vector<1x1x8x8xf32> to vector<8x8xf32>
    %c0_160 = arith.constant 0 : index
    %c15 = arith.constant 15 : index
    %131 = vector.load %arg11[%c0_160, %c15] : memref<8x240xf32, #tpu.memory_space<vmem>>, vector<8x195xf32>
    %cst_161 = arith.constant dense<0.000000e+00> : vector<8x195xf32>
    %132 = tpu.matmul %130, %131, %cst_161 {dimension_numbers = #tpu.dot_dimension_numbers<[1], [0], [0], [1], [0, 0, 1, 1], [], []>} : vector<8x8xf32>, vector<8x195xf32>, vector<8x195xf32> -> vector<8x195xf32>
    %133 = arith.addf %128, %132 : vector<8x195xf32>
    %c1_162 = arith.constant 1 : index
    %c1_163 = arith.constant 1 : index
    %c0_164 = arith.constant 0 : index
    %c0_165 = arith.constant 0 : index
    %134 = vector.load %arg8[%c1_162, %c1_163, %c0_164, %c0_165] : memref<3x3x8x8xf32, #tpu.memory_space<vmem>>, vector<1x1x8x8xf32>
    %135 = vector.shape_cast %134 : vector<1x1x8x8xf32> to vector<8x8xf32>
    %c0_166 = arith.constant 0 : index
    %c16 = arith.constant 16 : index
    %136 = vector.load %arg11[%c0_166, %c16] : memref<8x240xf32, #tpu.memory_space<vmem>>, vector<8x195xf32>
    %cst_167 = arith.constant dense<0.000000e+00> : vector<8x195xf32>
    %137 = tpu.matmul %135, %136, %cst_167 {dimension_numbers = #tpu.dot_dimension_numbers<[1], [0], [0], [1], [0, 0, 1, 1], [], []>} : vector<8x8xf32>, vector<8x195xf32>, vector<8x195xf32> -> vector<8x195xf32>
    %138 = arith.addf %133, %137 : vector<8x195xf32>
    %c1_168 = arith.constant 1 : index
    %c2_169 = arith.constant 2 : index
    %c0_170 = arith.constant 0 : index
    %c0_171 = arith.constant 0 : index
    %139 = vector.load %arg8[%c1_168, %c2_169, %c0_170, %c0_171] : memref<3x3x8x8xf32, #tpu.memory_space<vmem>>, vector<1x1x8x8xf32>
    %140 = vector.shape_cast %139 : vector<1x1x8x8xf32> to vector<8x8xf32>
    %c0_172 = arith.constant 0 : index
    %c17 = arith.constant 17 : index
    %141 = vector.load %arg11[%c0_172, %c17] : memref<8x240xf32, #tpu.memory_space<vmem>>, vector<8x195xf32>
    %cst_173 = arith.constant dense<0.000000e+00> : vector<8x195xf32>
    %142 = tpu.matmul %140, %141, %cst_173 {dimension_numbers = #tpu.dot_dimension_numbers<[1], [0], [0], [1], [0, 0, 1, 1], [], []>} : vector<8x8xf32>, vector<8x195xf32>, vector<8x195xf32> -> vector<8x195xf32>
    %143 = arith.addf %138, %142 : vector<8x195xf32>
    %c2_174 = arith.constant 2 : index
    %c0_175 = arith.constant 0 : index
    %c0_176 = arith.constant 0 : index
    %c0_177 = arith.constant 0 : index
    %144 = vector.load %arg8[%c2_174, %c0_175, %c0_176, %c0_177] : memref<3x3x8x8xf32, #tpu.memory_space<vmem>>, vector<1x1x8x8xf32>
    %145 = vector.shape_cast %144 : vector<1x1x8x8xf32> to vector<8x8xf32>
    %c0_178 = arith.constant 0 : index
    %c30 = arith.constant 30 : index
    %146 = vector.load %arg11[%c0_178, %c30] : memref<8x240xf32, #tpu.memory_space<vmem>>, vector<8x195xf32>
    %cst_179 = arith.constant dense<0.000000e+00> : vector<8x195xf32>
    %147 = tpu.matmul %145, %146, %cst_179 {dimension_numbers = #tpu.dot_dimension_numbers<[1], [0], [0], [1], [0, 0, 1, 1], [], []>} : vector<8x8xf32>, vector<8x195xf32>, vector<8x195xf32> -> vector<8x195xf32>
    %148 = arith.addf %143, %147 : vector<8x195xf32>
    %c2_180 = arith.constant 2 : index
    %c1_181 = arith.constant 1 : index
    %c0_182 = arith.constant 0 : index
    %c0_183 = arith.constant 0 : index
    %149 = vector.load %arg8[%c2_180, %c1_181, %c0_182, %c0_183] : memref<3x3x8x8xf32, #tpu.memory_space<vmem>>, vector<1x1x8x8xf32>
    %150 = vector.shape_cast %149 : vector<1x1x8x8xf32> to vector<8x8xf32>
    %c0_184 = arith.constant 0 : index
    %c31 = arith.constant 31 : index
    %151 = vector.load %arg11[%c0_184, %c31] : memref<8x240xf32, #tpu.memory_space<vmem>>, vector<8x195xf32>
    %cst_185 = arith.constant dense<0.000000e+00> : vector<8x195xf32>
    %152 = tpu.matmul %150, %151, %cst_185 {dimension_numbers = #tpu.dot_dimension_numbers<[1], [0], [0], [1], [0, 0, 1, 1], [], []>} : vector<8x8xf32>, vector<8x195xf32>, vector<8x195xf32> -> vector<8x195xf32>
    %153 = arith.addf %148, %152 : vector<8x195xf32>
    %c2_186 = arith.constant 2 : index
    %c2_187 = arith.constant 2 : index
    %c0_188 = arith.constant 0 : index
    %c0_189 = arith.constant 0 : index
    %154 = vector.load %arg8[%c2_186, %c2_187, %c0_188, %c0_189] : memref<3x3x8x8xf32, #tpu.memory_space<vmem>>, vector<1x1x8x8xf32>
    %155 = vector.shape_cast %154 : vector<1x1x8x8xf32> to vector<8x8xf32>
    %c0_190 = arith.constant 0 : index
    %c32_191 = arith.constant 32 : index
    %156 = vector.load %arg11[%c0_190, %c32_191] : memref<8x240xf32, #tpu.memory_space<vmem>>, vector<8x195xf32>
    %cst_192 = arith.constant dense<0.000000e+00> : vector<8x195xf32>
    %157 = tpu.matmul %155, %156, %cst_192 {dimension_numbers = #tpu.dot_dimension_numbers<[1], [0], [0], [1], [0, 0, 1, 1], [], []>} : vector<8x8xf32>, vector<8x195xf32>, vector<8x195xf32> -> vector<8x195xf32>
    %158 = arith.addf %153, %157 : vector<8x195xf32>
    %c0_193 = arith.constant 0 : index
    %c0_194 = arith.constant 0 : index
    %159 = vector.load %arg9[%c0_193, %c0_194] : memref<8x1xf32, #tpu.memory_space<vmem>>, vector<8x1xf32>
    %160 = vector.broadcast %159 : vector<8x1xf32> to vector<8x195xf32>
    %161 = arith.addf %158, %160 : vector<8x195xf32>
    %162 = vector.extract_strided_slice %161 {offsets = [0, 0], sizes = [1, 195], strides = [1, 1]} : vector<8x195xf32> to vector<1x195xf32>
    %c0_195 = arith.constant 0 : index
    %c0_196 = arith.constant 0 : index
    %c0_197 = arith.constant 0 : index
    %163 = vector.load %arg10[%c0_195, %c0_196, %c0_197] : memref<1x1x195xf32, #tpu.memory_space<vmem>>, vector<1x1x195xf32>
    %164 = vector.shape_cast %163 : vector<1x1x195xf32> to vector<1x195xf32>
    %165 = vector.shape_cast %162 : vector<1x195xf32> to vector<1x1x195xf32>
    tpu.vector_store %arg10[%c0_195, %c0_196, %c0_197], %165 {strides = array<i32>} : memref<1x1x195xf32, #tpu.memory_space<vmem>>, vector<1x1x195xf32>,
    return
  }
  func.func @transform_0(%arg0: i32) -> (i32, i32, i32, i32) {
    %c0_i32 = arith.constant 0 : i32
    %c0_i32_0 = arith.constant 0 : i32
    %c0_i32_1 = arith.constant 0 : i32
    %c0_i32_2 = arith.constant 0 : i32
    return %arg0, %c0_i32, %c0_i32_0, %c0_i32_1 : i32, i32, i32, i32
  }
  func.func @transform_1(%arg0: i32) -> (i32, i32, i32, i32) {
    %c0_i32 = arith.constant 0 : i32
    %c0_i32_0 = arith.constant 0 : i32
    %c0_i32_1 = arith.constant 0 : i32
    %c0_i32_2 = arith.constant 0 : i32
    %c0_i32_3 = arith.constant 0 : i32
    return %c0_i32, %c0_i32_0, %c0_i32_1, %c0_i32_2 : i32, i32, i32, i32
  }
  func.func @transform_2(%arg0: i32) -> (i32, i32) {
    %c0_i32 = arith.constant 0 : i32
    %c0_i32_0 = arith.constant 0 : i32
    %c0_i32_1 = arith.constant 0 : i32
    return %c0_i32, %c0_i32_0 : i32, i32
  }
  func.func @transform_3(%arg0: i32) -> (i32, i32) {
    %c0_i32 = arith.constant 0 : i32
    %c0_i32_0 = arith.constant 0 : i32
    %c0_i32_1 = arith.constant 0 : i32
    return %c0_i32, %c0_i32_0 : i32, i32
  }
  func.func @transform_4(%arg0: i32) -> (i32, i32, i32, i32) {
    %c0_i32 = arith.constant 0 : i32
    %c0_i32_0 = arith.constant 0 : i32
    %c0_i32_1 = arith.constant 0 : i32
    %c0_i32_2 = arith.constant 0 : i32
    %c0_i32_3 = arith.constant 0 : i32
    return %c0_i32, %c0_i32_0, %c0_i32_1, %c0_i32_2 : i32, i32, i32, i32
  }
  func.func @transform_5(%arg0: i32) -> (i32, i32) {
    %c0_i32 = arith.constant 0 : i32
    %c0_i32_0 = arith.constant 0 : i32
    %c0_i32_1 = arith.constant 0 : i32
    return %c0_i32, %c0_i32_0 : i32, i32
  }
  func.func @transform_6(%arg0: i32) -> (i32, i32) {
    %c0_i32 = arith.constant 0 : i32
    %c0_i32_0 = arith.constant 0 : i32
    %c0_i32_1 = arith.constant 0 : i32
    return %c0_i32, %c0_i32_0 : i32, i32
  }
  func.func @transform_7(%arg0: i32) -> (i32, i32, i32, i32) {
    %c0_i32 = arith.constant 0 : i32
    %c0_i32_0 = arith.constant 0 : i32
    %c0_i32_1 = arith.constant 0 : i32
    %c0_i32_2 = arith.constant 0 : i32
    %c0_i32_3 = arith.constant 0 : i32
    return %c0_i32, %c0_i32_0, %c0_i32_1, %c0_i32_2 : i32, i32, i32, i32
  }
  func.func @transform_8(%arg0: i32) -> (i32, i32) {
    %c0_i32 = arith.constant 0 : i32
    %c0_i32_0 = arith.constant 0 : i32
    %c0_i32_1 = arith.constant 0 : i32
    return %c0_i32, %c0_i32_0 : i32, i32
  }
  func.func @transform_9(%arg0: i32) -> (i32, i32, i32) {
    %c0_i32 = arith.constant 0 : i32
    %c0_i32_0 = arith.constant 0 : i32
    %c0_i32_1 = arith.constant 0 : i32
    return %arg0, %c0_i32, %c0_i32_0 : i32, i32, i32
  }
}

</mosaic_0001>

<llo_original>
// kernel: deconv_layer_pallas.1
$region0: #{deconv_layer_pallas.1}
  #allocation0 [shape = 'u32[]', space=smem, size = 0x4, offset = 0x4, fixed_abs, tag = 'smem constant byte address 0x4 - core index']
  #allocation1 [shape = 'u32[144,128]{1,0:T(1,128)}', space=vmem, size = 0x12000, scoped, tag = 'internal scratch']
  #allocation2 [shape = 'f32[8,240]{1,0:T(8,128)}', space=vmem, size = 0x2000, scoped, tag = 'scratch operand']
  #allocation3 [shape = 'f32[8,240]{1,0:T(8,128)}', space=vmem, size = 0x2000, scoped, tag = 'scratch operand']
  %s0 = inlined_call_operand.hbm [shape: f32[2,4,8,8], index: 0, kind: input, shape index: {}]
  %s1 = inlined_call_operand.vmem [shape: f32[2,2,8,8], index: 1, kind: input, shape index: {}]
  %s2 = inlined_call_operand.vmem [shape: f32[8,1], index: 2, kind: input, shape index: {}]
  %s3 = inlined_call_operand.vmem [shape: f32[1,135], index: 3, kind: input, shape index: {}]
  %s4 = inlined_call_operand.hbm [shape: f32[3,3,8,8], index: 4, kind: input, shape index: {}]
  %s5 = inlined_call_operand.vmem [shape: f32[8,1], index: 5, kind: input, shape index: {}]
  %s6 = inlined_call_operand.vmem [shape: f32[1,165], index: 6, kind: input, shape index: {}]
  %s7 = inlined_call_operand.hbm [shape: f32[3,3,8,8], index: 7, kind: input, shape index: {}]
  %s8 = inlined_call_operand.vmem [shape: f32[8,1], index: 8, kind: input, shape index: {}]
  %s9 = inlined_call_operand.vmem [shape: f32[2,1,195], index: 9, kind: output, shape index: {}]
  %s10 = sld [smem:[#allocation0]]
  $region81: #{deconv_layer_pallas.1} parent=0
    _
  %s12 = ssub.s32 1, %s10
  %s13 = scalar_select 0, %s12, %s10
  $region1: #{deconv_layer_pallas.1} parent=0
    #allocation4 [shape = 'u8[32768]{0}', space=vmem, size = 0x8000, scoped, tag = 'input window, operand 0']
    #allocation5 [shape = 's32[2]{0}', space=sflag, size = 0x8, scoped, tag = 'scoped memory for deconv_layer_pallas.1']
    #allocation6 [shape = 'u8[36864]{0}', space=vmem, size = 0x9000, scoped, tag = 'input window, operand 4, single buffered']
    #allocation7 [shape = 's32[1]{0}', space=sflag, size = 0x4, scoped, tag = 'scoped memory for deconv_layer_pallas.1']
    #allocation8 [shape = 'u8[36864]{0}', space=vmem, size = 0x9000, scoped, tag = 'input window, operand 7, single buffered']
    %14 = vsyncpa [#allocation5], 0
    %s15 = scalar_lea.sflag [#allocation5], 1
    %16 = vsyncpa %s15, 0
    %17 = vsyncpa [#allocation7], 0
    loop: start=0, step=1, limit=4
    $region2: #{deconv_layer_pallas.1} parent=1 // loop_pre_header
      _
    $region3: #{deconv_layer_pallas.1} parent=1 // loop_header
      %s19 = sphi 0, %s23
      %p20 = scmp.ge.s32.totalorder %s19, 4
      %s29 = sphi 0, %s31
      %s32 = sphi 0, %s29
      %s33 = sphi 0, %s32
      %s49 = sphi 0, %s33
      %s53 = sphi 0, %s53
      %s55 = sphi 0, %s53
      %s56 = sphi 0, %s55
      %s70 = sphi 0, %s56
      %s74 = sphi 0, %s74
      %s76 = sphi 0, %s74
      %s77 = sphi 0, %s76
      %s91 = sphi 0, %s77
      %s95 = sphi 0, %s95
      %s97 = sphi 0, %s95
      %s98 = sphi 0, %s97
      %s112 = sphi 0, %s98
      %s116 = sphi 0, %s116
      %s118 = sphi 0, %s116
      %s119 = sphi 0, %s118
      %s133 = sphi 0, %s119
      %s137 = sphi 0, %s137
      %s139 = sphi 0, %s137
      %s140 = sphi 0, %s139
      %s154 = sphi 0, %s140
      %s158 = sphi 0, %s158
      %s160 = sphi 0, %s158
      %s161 = sphi 0, %s160
      %s175 = sphi 0, %s161
      %s179 = sphi 0, %s179
      %s181 = sphi 0, %s179
      %s182 = sphi 0, %s181
      %s196 = sphi 0, %s182
      %s200 = sphi 0, %s200
      %s202 = sphi 0, %s200
      %s203 = sphi 0, %s202
      %s217 = sphi 0, %s203
      %s223 = sphi 0, %s225
      %s226 = sphi 0, %s223
      %s227 = sphi 0, %s226
      %s243 = sphi 0, %s227
    $region4: #{deconv_layer_pallas.1} parent=1 // loop_header_branch
      %22 = sbr.rel (%p20) target = $region8
    $region5: #{deconv_layer_pallas.1} parent=1 // loop_body
      %s24 = ssub.s32 %s19, 1
      %s25 = ssub.s32 %s19, 2
      %s26 = sadd.s32 %s19, 1
      %s27 = ssub.s32 %s19, %s26
      %p28 = scmp.eq.s32.totalorder %s27, 0
      %s30 = sadd.s32 %s29, 1
      %s31 = scalar_select %p28, %s29, %s30
      %p34 = pneg %p28
      %p35 = scmp.eq.s32.totalorder %s19, 1
      %p36 = por %p34, %p35
      %p37 = scmp.ne.s32.totalorder %s29, %s32
      %p38 = scmp.eq.s32.totalorder %s19, 0
      %p39 = por %p37, %p38
      %p40 = scmp.ne.s32.totalorder %s29, %s32
      %p41 = scmp.eq.s32.totalorder %s24, 1
      %p42 = por %p40, %p41
      %p43 = scmp.ne.s32.totalorder %s32, %s33
      %p44 = scmp.eq.s32.totalorder %s24, 0
      %p45 = por %p43, %p44
      %p46 = scmp.ne.s32.totalorder %s32, %s33
      %p47 = scmp.eq.s32.totalorder %s25, 1
      %p48 = por %p46, %p47
      %p50 = scmp.ne.s32.totalorder %s33, %s49
      %p51 = scmp.eq.s32.totalorder %s25, 0
      %p52 = por %p50, %p51
      %s54 = sadd.s32 %s53, 1
      %p57 = scmp.eq.s32.totalorder %s19, 1
      %p58 = scmp.ne.s32.totalorder %s53, %s55
      %p59 = scmp.eq.s32.totalorder %s19, 0
      %p60 = por %p58, %p59
      %p61 = scmp.ne.s32.totalorder %s53, %s55
      %p62 = scmp.eq.s32.totalorder %s24, 1
      %p63 = por %p61, %p62
      %p64 = scmp.ne.s32.totalorder %s55, %s56
      %p65 = scmp.eq.s32.totalorder %s24, 0
      %p66 = por %p64, %p65
      %p67 = scmp.ne.s32.totalorder %s55, %s56
      %p68 = scmp.eq.s32.totalorder %s25, 1
      %p69 = por %p67, %p68
      %p71 = scmp.ne.s32.totalorder %s56, %s70
      %p72 = scmp.eq.s32.totalorder %s25, 0
      %p73 = por %p71, %p72
      %s75 = sadd.s32 %s74, 1
      %p78 = scmp.eq.s32.totalorder %s19, 1
      %p79 = scmp.ne.s32.totalorder %s74, %s76
      %p80 = scmp.eq.s32.totalorder %s19, 0
      %p81 = por %p79, %p80
      %p82 = scmp.ne.s32.totalorder %s74, %s76
      %p83 = scmp.eq.s32.totalorder %s24, 1
      %p84 = por %p82, %p83
      %p85 = scmp.ne.s32.totalorder %s76, %s77
      %p86 = scmp.eq.s32.totalorder %s24, 0
      %p87 = por %p85, %p86
      %p88 = scmp.ne.s32.totalorder %s76, %s77
      %p89 = scmp.eq.s32.totalorder %s25, 1
      %p90 = por %p88, %p89
      %p92 = scmp.ne.s32.totalorder %s77, %s91
      %p93 = scmp.eq.s32.totalorder %s25, 0
      %p94 = por %p92, %p93
      %s96 = sadd.s32 %s95, 1
      %p99 = scmp.eq.s32.totalorder %s19, 1
      %p100 = scmp.ne.s32.totalorder %s95, %s97
      %p101 = scmp.eq.s32.totalorder %s19, 0
      %p102 = por %p100, %p101
      %p103 = scmp.ne.s32.totalorder %s95, %s97
      %p104 = scmp.eq.s32.totalorder %s24, 1
      %p105 = por %p103, %p104
      %p106 = scmp.ne.s32.totalorder %s97, %s98
      %p107 = scmp.eq.s32.totalorder %s24, 0
      %p108 = por %p106, %p107
      %p109 = scmp.ne.s32.totalorder %s97, %s98
      %p110 = scmp.eq.s32.totalorder %s25, 1
      %p111 = por %p109, %p110
      %p113 = scmp.ne.s32.totalorder %s98, %s112
      %p114 = scmp.eq.s32.totalorder %s25, 0
      %p115 = por %p113, %p114
      %s117 = sadd.s32 %s116, 1
      %p120 = scmp.eq.s32.totalorder %s19, 1
      %p121 = scmp.ne.s32.totalorder %s116, %s118
      %p122 = scmp.eq.s32.totalorder %s19, 0
      %p123 = por %p121, %p122
      %p124 = scmp.ne.s32.totalorder %s116, %s118
      %p125 = scmp.eq.s32.totalorder %s24, 1
      %p126 = por %p124, %p125
      %p127 = scmp.ne.s32.totalorder %s118, %s119
      %p128 = scmp.eq.s32.totalorder %s24, 0
      %p129 = por %p127, %p128
      %p130 = scmp.ne.s32.totalorder %s118, %s119
      %p131 = scmp.eq.s32.totalorder %s25, 1
      %p132 = por %p130, %p131
      %p134 = scmp.ne.s32.totalorder %s119, %s133
      %p135 = scmp.eq.s32.totalorder %s25, 0
      %p136 = por %p134, %p135
      %s138 = sadd.s32 %s137, 1
      %p141 = scmp.eq.s32.totalorder %s19, 1
      %p142 = scmp.ne.s32.totalorder %s137, %s139
      %p143 = scmp.eq.s32.totalorder %s19, 0
      %p144 = por %p142, %p143
      %p145 = scmp.ne.s32.totalorder %s137, %s139
      %p146 = scmp.eq.s32.totalorder %s24, 1
      %p147 = por %p145, %p146
      %p148 = scmp.ne.s32.totalorder %s139, %s140
      %p149 = scmp.eq.s32.totalorder %s24, 0
      %p150 = por %p148, %p149
      %p151 = scmp.ne.s32.totalorder %s139, %s140
      %p152 = scmp.eq.s32.totalorder %s25, 1
      %p153 = por %p151, %p152
      %p155 = scmp.ne.s32.totalorder %s140, %s154
      %p156 = scmp.eq.s32.totalorder %s25, 0
      %p157 = por %p155, %p156
      %s159 = sadd.s32 %s158, 1
      %p162 = scmp.eq.s32.totalorder %s19, 1
      %p163 = scmp.ne.s32.totalorder %s158, %s160
      %p164 = scmp.eq.s32.totalorder %s19, 0
      %p165 = por %p163, %p164
      %p166 = scmp.ne.s32.totalorder %s158, %s160
      %p167 = scmp.eq.s32.totalorder %s24, 1
      %p168 = por %p166, %p167
      %p169 = scmp.ne.s32.totalorder %s160, %s161
      %p170 = scmp.eq.s32.totalorder %s24, 0
      %p171 = por %p169, %p170
      %p172 = scmp.ne.s32.totalorder %s160, %s161
      %p173 = scmp.eq.s32.totalorder %s25, 1
      %p174 = por %p172, %p173
      %p176 = scmp.ne.s32.totalorder %s161, %s175
      %p177 = scmp.eq.s32.totalorder %s25, 0
      %p178 = por %p176, %p177
      %s180 = sadd.s32 %s179, 1
      %p183 = scmp.eq.s32.totalorder %s19, 1
      %p184 = scmp.ne.s32.totalorder %s179, %s181
      %p185 = scmp.eq.s32.totalorder %s19, 0
      %p186 = por %p184, %p185
      %p187 = scmp.ne.s32.totalorder %s179, %s181
      %p188 = scmp.eq.s32.totalorder %s24, 1
      %p189 = por %p187, %p188
      %p190 = scmp.ne.s32.totalorder %s181, %s182
      %p191 = scmp.eq.s32.totalorder %s24, 0
      %p192 = por %p190, %p191
      %p193 = scmp.ne.s32.totalorder %s181, %s182
      %p194 = scmp.eq.s32.totalorder %s25, 1
      %p195 = por %p193, %p194
      %p197 = scmp.ne.s32.totalorder %s182, %s196
      %p198 = scmp.eq.s32.totalorder %s25, 0
      %p199 = por %p197, %p198
      %s201 = sadd.s32 %s200, 1
      %p204 = scmp.eq.s32.totalorder %s19, 1
      %p205 = scmp.ne.s32.totalorder %s200, %s202
      %p206 = scmp.eq.s32.totalorder %s19, 0
      %p207 = por %p205, %p206
      %p208 = scmp.ne.s32.totalorder %s200, %s202
      %p209 = scmp.eq.s32.totalorder %s24, 1
      %p210 = por %p208, %p209
      %p211 = scmp.ne.s32.totalorder %s202, %s203
      %p212 = scmp.eq.s32.totalorder %s24, 0
      %p213 = por %p211, %p212
      %p214 = scmp.ne.s32.totalorder %s202, %s203
      %p215 = scmp.eq.s32.totalorder %s25, 1
      %p216 = por %p214, %p215
      %p218 = scmp.ne.s32.totalorder %s203, %s217
      %p219 = scmp.eq.s32.totalorder %s25, 0
      %p220 = por %p218, %p219
      %s221 = ssub.s32 %s19, %s26
      %p222 = scmp.eq.s32.totalorder %s221, 0
      %s224 = sadd.s32 %s223, 1
      %s225 = scalar_select %p222, %s223, %s224
      %p228 = pneg %p222
      %p229 = scmp.eq.s32.totalorder %s19, 1
      %p230 = por %p228, %p229
      %p231 = scmp.ne.s32.totalorder %s223, %s226
      %p232 = scmp.eq.s32.totalorder %s19, 0
      %p233 = por %p231, %p232
      %p234 = scmp.ne.s32.totalorder %s223, %s226
      %p235 = scmp.eq.s32.totalorder %s24, 1
      %p236 = por %p234, %p235
      %p237 = scmp.ne.s32.totalorder %s226, %s227
      %p238 = scmp.eq.s32.totalorder %s24, 0
      %p239 = por %p237, %p238
      %p240 = scmp.ne.s32.totalorder %s226, %s227
      %p241 = scmp.eq.s32.totalorder %s25, 1
      %p242 = por %p240, %p241
      %p244 = scmp.ne.s32.totalorder %s227, %s243
      %p245 = scmp.eq.s32.totalorder %s25, 0
      %p246 = por %p244, %p245
      %p247 = scmp.le.s32.totalorder 1, %s19
      %p248 = scmp.lt.s32.totalorder %s19, 3
      %p249 = pnand %p247, %p248
      %p250 = pneg %p249
      // Predicated region
      $region9: #{deconv_layer_pallas.1} parent=5 // pred_check
        _
      $region10: #{deconv_layer_pallas.1} parent=5 // pred_check_branch
        %252 = sbr.rel (%p249) target = $region12
      $region11: #{deconv_layer_pallas.1} parent=5 // pred_region
        %s253 = ssub.s32 %s19, 1
        // Predicated region
        $region13: #{deconv_layer_pallas.1} parent=11 // pred_check
          %p254 = pneg %p66
        $region14: #{deconv_layer_pallas.1} parent=11 // pred_check_branch
          %256 = sbr.rel (%p254) target = $region16
        $region15: #{deconv_layer_pallas.1} parent=11 // pred_region
          _
        $region16: #{deconv_layer_pallas.1} parent=11 // pred_fallthru
          _
        // Predicated region
        $region17: #{deconv_layer_pallas.1} parent=11 // pred_check
          %p257 = pneg %p87
        $region18: #{deconv_layer_pallas.1} parent=11 // pred_check_branch
          %259 = sbr.rel (%p257) target = $region20
        $region19: #{deconv_layer_pallas.1} parent=11 // pred_region
          _
        $region20: #{deconv_layer_pallas.1} parent=11 // pred_fallthru
          _
        // Predicated region
        $region21: #{deconv_layer_pallas.1} parent=11 // pred_check
          %p260 = pneg %p108
        $region22: #{deconv_layer_pallas.1} parent=11 // pred_check_branch
          %262 = sbr.rel (%p260) target = $region24
        $region23: #{deconv_layer_pallas.1} parent=11 // pred_region
          _
        $region24: #{deconv_layer_pallas.1} parent=11 // pred_fallthru
          _
        // Predicated region
        $region25: #{deconv_layer_pallas.1} parent=11 // pred_check
          %p263 = pneg %p129
        $region26: #{deconv_layer_pallas.1} parent=11 // pred_check_branch
          %265 = sbr.rel (%p263) target = $region28
        $region27: #{deconv_layer_pallas.1} parent=11 // pred_region
          %s267 = ssub.s32 1152, 1152
          %268 = vsyncadd [#allocation7], %s267
          %s269 = sshll.u32 [#allocation6], 4
          %s270 = int_to_ptr.vmem [resolvable:$true] %s269
          %275 = dma.hbm_to_vmem [thread:$0]  %s4, 1152, %s270, [#allocation7], 128, 128, 8
        $region28: #{deconv_layer_pallas.1} parent=11 // pred_fallthru
          _
        // Predicated region
        $region29: #{deconv_layer_pallas.1} parent=11 // pred_check
          %p276 = pneg %p150
        $region30: #{deconv_layer_pallas.1} parent=11 // pred_check_branch
          %278 = sbr.rel (%p276) target = $region32
        $region31: #{deconv_layer_pallas.1} parent=11 // pred_region
          _
        $region32: #{deconv_layer_pallas.1} parent=11 // pred_fallthru
          _
        // Predicated region
        $region33: #{deconv_layer_pallas.1} parent=11 // pred_check
          %p279 = pneg %p171
        $region34: #{deconv_layer_pallas.1} parent=11 // pred_check_branch
          %281 = sbr.rel (%p279) target = $region36
        $region35: #{deconv_layer_pallas.1} parent=11 // pred_region
          _
        $region36: #{deconv_layer_pallas.1} parent=11 // pred_fallthru
          _
        // Predicated region
        $region37: #{deconv_layer_pallas.1} parent=11 // pred_check
          %p282 = pneg %p192
        $region38: #{deconv_layer_pallas.1} parent=11 // pred_check_branch
          %284 = sbr.rel (%p282) target = $region40
        $region39: #{deconv_layer_pallas.1} parent=11 // pred_region
          %s286 = ssub.s32 1152, 1152
          %287 = vsyncadd [#allocation7], %s286
          %s288 = sshll.u32 [#allocation8], 4
          %s289 = int_to_ptr.vmem [resolvable:$true] %s288
          %294 = dma.hbm_to_vmem [thread:$0]  %s7, 1152, %s289, [#allocation7], 128, 128, 8
        $region40: #{deconv_layer_pallas.1} parent=11 // pred_fallthru
          _
        // Predicated region
        $region41: #{deconv_layer_pallas.1} parent=11 // pred_check
          %p295 = pneg %p213
        $region42: #{deconv_layer_pallas.1} parent=11 // pred_check_branch
          %297 = sbr.rel (%p295) target = $region44
        $region43: #{deconv_layer_pallas.1} parent=11 // pred_region
          _
        $region44: #{deconv_layer_pallas.1} parent=11 // pred_fallthru
          _
      $region12: #{deconv_layer_pallas.1} parent=5 // pred_fallthru
        _
      %p298 = scmp.lt.s32.totalorder %s19, 2
      // Predicated region
      $region45: #{deconv_layer_pallas.1} parent=5 // pred_check
        %p299 = pneg %p298
      $region46: #{deconv_layer_pallas.1} parent=5 // pred_check_branch
        %301 = sbr.rel (%p299) target = $region48
      $region47: #{deconv_layer_pallas.1} parent=5 // pred_region
        // Predicated region
        $region49: #{deconv_layer_pallas.1} parent=47 // pred_check
          %p302 = pneg %p39
        $region50: #{deconv_layer_pallas.1} parent=47 // pred_check_branch
          %304 = sbr.rel (%p302) target = $region52
        $region51: #{deconv_layer_pallas.1} parent=47 // pred_region
          %s305 = sand.u32 %s29, 1
          %s306 = scalar_lea.sflag [#allocation5], %s305
          %s307 = sand.u32 %s29, 1
          %s308 = smul.addr %s307, 32
          %s309 = scalar_lea.vmem [#allocation4], %s308
          %s311 = ssub.s32 512, 512
          %312 = vsyncadd %s306, %s311
          %s313 = smul.addr %s19, 4
          %s314 = smul.addr %s313, 128
          %s315 = scalar_lea.hbm %s0, %s314
          %s316 = sshll.u32 %s309, 4
          %s317 = int_to_ptr.vmem [resolvable:$true] %s316
          %322 = dma.hbm_to_vmem [thread:$0]  %s315, 512, %s317, %s306, 128, 128, 8
        $region52: #{deconv_layer_pallas.1} parent=47 // pred_fallthru
          _
      $region48: #{deconv_layer_pallas.1} parent=5 // pred_fallthru
        _
      %p323 = scmp.le.s32.totalorder 1, %s19
      %p324 = scmp.lt.s32.totalorder %s19, 3
      %p325 = pnand %p323, %p324
      %p326 = pneg %p325
      // Predicated region
      $region53: #{deconv_layer_pallas.1} parent=5 // pred_check
        _
      $region54: #{deconv_layer_pallas.1} parent=5 // pred_check_branch
        %328 = sbr.rel (%p325) target = $region56
      $region55: #{deconv_layer_pallas.1} parent=5 // pred_region
        %s329 = ssub.s32 %s19, 1
        %s330 = sand.u32 %s32, 1
        %s331 = scalar_lea.sflag [#allocation5], %s330
        %s332 = sand.u32 %s32, 1
        %s333 = smul.addr %s332, 32
        %s334 = scalar_lea.vmem [#allocation4], %s333
        // Predicated region
        $region57: #{deconv_layer_pallas.1} parent=55 // pred_check
          %p335 = pneg %p45
        $region58: #{deconv_layer_pallas.1} parent=55 // pred_check_branch
          %337 = sbr.rel (%p335) target = $region60
        $region59: #{deconv_layer_pallas.1} parent=55 // pred_region
          %338 = dma.done %s331, 512
        $region60: #{deconv_layer_pallas.1} parent=55 // pred_fallthru
          _
        // Predicated region
        $region61: #{deconv_layer_pallas.1} parent=55 // pred_check
          %p339 = pneg %p129
        $region62: #{deconv_layer_pallas.1} parent=55 // pred_check_branch
          %341 = sbr.rel (%p339) target = $region64
        $region63: #{deconv_layer_pallas.1} parent=55 // pred_region
          %342 = dma.done [#allocation7], 1152
        $region64: #{deconv_layer_pallas.1} parent=55 // pred_fallthru
          _
        // Predicated region
        $region65: #{deconv_layer_pallas.1} parent=55 // pred_check
          %p343 = pneg %p192
        $region66: #{deconv_layer_pallas.1} parent=55 // pred_check_branch
          %345 = sbr.rel (%p343) target = $region68
        $region67: #{deconv_layer_pallas.1} parent=55 // pred_region
          %346 = dma.done [#allocation7], 1152
        $region68: #{deconv_layer_pallas.1} parent=55 // pred_fallthru
          _
        %s347 = sand.u32 %s32, 1
        %s348 = scalar_lea.sflag [#allocation5], %s347
        %s349 = sand.u32 %s32, 1
        %s350 = smul.addr %s349, 32
        %s351 = scalar_lea.vmem [#allocation4], %s350
        %p352 = pneg %p45
        %p353 = pneg %p42
        %p354 = pneg %p66
        %p355 = pneg %p63
        %p356 = pneg %p87
        %p357 = pneg %p84
        %p358 = pneg %p108
        %p359 = pneg %p105
        %p360 = pneg %p129
        %p361 = pneg %p126
        %p362 = pneg %p150
        %p363 = pneg %p147
        %p364 = pneg %p171
        %p365 = pneg %p168
        %p366 = pneg %p192
        %p367 = pneg %p189
        %p368 = pneg %p213
        %p369 = pneg %p210
        %p370 = pneg %p239
        %p371 = pneg %p236
        %p372 = scmp.lt.s32.totalorder %s24, 1
        %s373 = scalar_select %p372, %s24, 1
        %s374 = smul.addr %s373, 2
        %s375 = scalar_lea.vmem %s9, %s374
        %p376 = scmp.lt.s32.totalorder %s24, 1
        %s377 = scalar_select %p376, %s24, 1
        %s378 = smul.addr %s377, 2
        %s379 = scalar_lea.vmem %s9, %s378
        %380 = vst [vmem:[#allocation2] sm:$0xff] 0.0
        %vm381 = vcmask 916480
        %382 = vst.msk [vmem:[#allocation2 + $0x8] sm:$0xff] %vm381, 0.0
        %383 = vst [vmem:[#allocation3] sm:$0xff] 0.0
        %384 = vst.msk [vmem:[#allocation3 + $0x8] sm:$0xff] %vm381, 0.0
        %v385 = vld [vmem:[%s334] sm:$0x1]
        %v386 = vld [vmem:[%s334 + $0x8] sm:$0x1]
        %v387 = vld [vmem:[%s334 + $0x10] sm:$0x1]
        %v388 = vld [vmem:[%s334 + $0x18] sm:$0x1]
        %v393 = vrot.slane %v386, 7
        %vm394 = vcmask 1041409
        %v395 = vsel %vm394, %v393, %v385
        %v396 = vrot.slane %v387, 6
        %vm397 = vcmask 1042434
        %v398 = vsel %vm397, %v396, %v395
        %v399 = vrot.slane %v388, 5
        %vm400 = vcmask 1043459
        %v401 = vsel %vm400, %v399, %v398
        %402 = vrot.lane.b32.xlu0 %v401, 80
        %v403 = vpop.permute.xlu0 %402
        %vm405 = vcmask 716416
        %406 = vst.msk [vmem:[#allocation2] sm:$0xf] %vm405, %v403
        %v407 = vld [vmem:[%s334 + $0x1] sm:$0x1]
        %v408 = vld [vmem:[%s334 + $0x9] sm:$0x1]
        %v409 = vld [vmem:[%s334 + $0x11] sm:$0x1]
        %v410 = vld [vmem:[%s334 + $0x19] sm:$0x1]
        %v415 = vrot.slane %v408, 7
        %v416 = vsel %vm394, %v415, %v407
        %v417 = vrot.slane %v409, 6
        %v418 = vsel %vm397, %v417, %v416
        %v419 = vrot.slane %v410, 5
        %v420 = vsel %vm400, %v419, %v418
        %421 = vrot.lane.b32.xlu0 %v420, 95
        %v422 = vpop.permute.xlu0 %421
        %vm424 = vcmask 839416
        %425 = vst.msk [vmem:[#allocation2] sm:$0xf] %vm424, %v422
        %v426 = vld [vmem:[%s334 + $0x2] sm:$0x1]
        %v427 = vld [vmem:[%s334 + $0xa] sm:$0x1]
        %v428 = vld [vmem:[%s334 + $0x12] sm:$0x1]
        %v429 = vld [vmem:[%s334 + $0x1a] sm:$0x1]
        %v434 = vrot.slane %v427, 7
        %v435 = vsel %vm394, %v434, %v426
        %v436 = vrot.slane %v428, 6
        %v437 = vsel %vm397, %v436, %v435
        %v438 = vrot.slane %v429, 5
        %v439 = vsel %vm400, %v438, %v437
        %440 = vrot.lane.b32.xlu0 %v439, 110
        %v441 = vpop.permute.xlu0 %440
        %vm443 = vcmask 962416
        %444 = vst.msk [vmem:[#allocation2] sm:$0xf] %vm443, %v441
        %v445 = vld [vmem:[%s334 + $0x3] sm:$0x1]
        %v446 = vld [vmem:[%s334 + $0xb] sm:$0x1]
        %v447 = vld [vmem:[%s334 + $0x13] sm:$0x1]
        %v448 = vld [vmem:[%s334 + $0x1b] sm:$0x1]
        %v453 = vrot.slane %v446, 7
        %v454 = vsel %vm394, %v453, %v445
        %v455 = vrot.slane %v447, 6
        %v456 = vsel %vm397, %v455, %v454
        %v457 = vrot.slane %v448, 5
        %v458 = vsel %vm400, %v457, %v456
        %459 = vrot.lane.b32.xlu0 %v458, 125
        %v460 = vpop.permute.xlu0 %459
        %vm462 = vcmask 1044456
        %463 = vst.msk [vmem:[#allocation2] sm:$0xf] %vm462, %v460
        %vm464 = vcmask 35840
        %465 = vst.msk [vmem:[#allocation2 + $0x8] sm:$0xf] %vm464, %v460
        %v466 = vld [vmem:[%s334 + $0x4] sm:$0x1]
        %v467 = vld [vmem:[%s334 + $0xc] sm:$0x1]
        %v468 = vld [vmem:[%s334 + $0x14] sm:$0x1]
        %v469 = vld [vmem:[%s334 + $0x1c] sm:$0x1]
        %v474 = vrot.slane %v467, 7
        %v475 = vsel %vm394, %v474, %v466
        %v476 = vrot.slane %v468, 6
        %v477 = vsel %vm397, %v476, %v475
        %v478 = vrot.slane %v469, 5
        %v479 = vsel %vm400, %v478, %v477
        %480 = vrot.lane.b32.xlu0 %v479, 12
        %v481 = vpop.permute.xlu0 %480
        %vm483 = vcmask 158816
        %484 = vst.msk [vmem:[#allocation2 + $0x8] sm:$0xf] %vm483, %v481
        %v485 = vld [vmem:[%s334 + $0x5] sm:$0x1]
        %v486 = vld [vmem:[%s334 + $0xd] sm:$0x1]
        %v487 = vld [vmem:[%s334 + $0x15] sm:$0x1]
        %v488 = vld [vmem:[%s334 + $0x1d] sm:$0x1]
        %v493 = vrot.slane %v486, 7
        %v494 = vsel %vm394, %v493, %v485
        %v495 = vrot.slane %v487, 6
        %v496 = vsel %vm397, %v495, %v494
        %v497 = vrot.slane %v488, 5
        %v498 = vsel %vm400, %v497, %v496
        %499 = vrot.lane.b32.xlu0 %v498, 27
        %v500 = vpop.permute.xlu0 %499
        %vm502 = vcmask 281816
        %503 = vst.msk [vmem:[#allocation2 + $0x8] sm:$0xf] %vm502, %v500
        %v504 = vld [vmem:[%s334 + $0x6] sm:$0x1]
        %v505 = vld [vmem:[%s334 + $0xe] sm:$0x1]
        %v506 = vld [vmem:[%s334 + $0x16] sm:$0x1]
        %v507 = vld [vmem:[%s334 + $0x1e] sm:$0x1]
        %v512 = vrot.slane %v505, 7
        %v513 = vsel %vm394, %v512, %v504
        %v514 = vrot.slane %v506, 6
        %v515 = vsel %vm397, %v514, %v513
        %v516 = vrot.slane %v507, 5
        %v517 = vsel %vm400, %v516, %v515
        %518 = vrot.lane.b32.xlu0 %v517, 42
        %v519 = vpop.permute.xlu0 %518
        %vm521 = vcmask 404816
        %522 = vst.msk [vmem:[#allocation2 + $0x8] sm:$0xf] %vm521, %v519
        %v523 = vld [vmem:[%s334 + $0x7] sm:$0x1]
        %v524 = vld [vmem:[%s334 + $0xf] sm:$0x1]
        %v525 = vld [vmem:[%s334 + $0x17] sm:$0x1]
        %v526 = vld [vmem:[%s334 + $0x1f] sm:$0x1]
        %v531 = vrot.slane %v524, 7
        %v532 = vsel %vm394, %v531, %v523
        %v533 = vrot.slane %v525, 6
        %v534 = vsel %vm397, %v533, %v532
        %v535 = vrot.slane %v526, 5
        %v536 = vsel %vm400, %v535, %v534
        %537 = vrot.lane.b32.xlu0 %v536, 57
        %v538 = vpop.permute.xlu0 %537
        %vm540 = vcmask 527816
        %541 = vst.msk [vmem:[#allocation2 + $0x8] sm:$0xf] %vm540, %v538
        %v542 = vld [vmem:[%s1] sm:$0xff]
        %v543 = vld [vmem:[#allocation2] sm:$0xff]
        %v544 = vld [vmem:[#allocation2 + $0x8] sm:$0xff]
        %s545 = scalar_lea.vmem %s1, 8
        %v546 = vld [vmem:[%s545] sm:$0xff]
        %549 = vrot.lane.b32.xlu0 %v543, 63
        %v550 = vpop.permute.xlu0 %549
        %551 = vrot.lane.b32.xlu0 %v544, 63
        %v552 = vpop.permute.xlu0 %551
        %vm553 = vcmask 515072
        %v554 = vsel %vm553, %v550, %v552
        %vm557 = vcmask 64512
        %v559 = vsel %vm557, %v546, 0
        %561 = vmatprep.subr.mxu0 %v552
        %562 = vmatpush1.msra.mxu0 %v554
        %563 = vmatprep.subr.mxu0 0.0
        %564 = vmatpush1.msra.mxu0 0.0
        %565 = vmatprep.subr.mxu0 0.0
        %566 = vmatpush1.msra.mxu0 0.0
        %567 = vmatprep.subr.mxu0 0.0
        %568 = vmatpush1.msra.mxu0 0.0
        %569 = vmatprep.subr.mxu0 0.0
        %570 = vmatpush1.msra.mxu0 0.0
        %571 = vmatprep.subr.mxu0 0.0
        %572 = vmatpush1.msra.mxu0 0.0
        %573 = vmatprep.subr.mxu0 0.0
        %574 = vmatpush1.msra.mxu0 0.0
        %575 = vmatprep.subr.mxu0 0.0
        %576 = vmatpush1.msra.mxu0 0.0
        %577 = vmatprep.subr.mxu0 0.0
        %578 = vmatpush1.msra.mxu0 0.0
        %579 = vmatprep.subr.mxu0 0.0
        %580 = vmatpush1.msra.mxu0 0.0
        %581 = vmatprep.subr.mxu0 0.0
        %582 = vmatpush1.msra.mxu0 0.0
        %583 = vmatprep.subr.mxu0 0.0
        %584 = vmatpush1.msra.mxu0 0.0
        %585 = vmatprep.subr.mxu0 0.0
        %586 = vmatpush1.msra.mxu0 0.0
        %587 = vmatprep.subr.mxu0 0.0
        %588 = vmatpush1.msra.mxu0 0.0
        %589 = vmatprep.subr.mxu0 0.0
        %590 = vmatpush1.msra.mxu0 0.0
        %591 = vmatprep.subr.mxu0 0.0
        %592 = vmatpush1.msra.mxu0 0.0
        %593 = vmatprep.subr.mxu0 0.0
        %594 = vmatpush1.msra.mxu0 0.0
        %595 = vmatprep.subr.mxu0 0.0
        %596 = vmatpush1.msra.mxu0 0.0
        %597 = vmatprep.subr.mxu0 0.0
        %598 = vmatpush1.msra.mxu0 0.0
        %599 = vmatprep.subr.mxu0 0.0
        %600 = vmatpush1.msra.mxu0 0.0
        %601 = vmatprep.subr.mxu0 0.0
        %602 = vmatpush1.msra.mxu0 0.0
        %603 = vmatprep.subr.mxu0 0.0
        %604 = vmatpush1.msra.mxu0 0.0
        %605 = vmatprep.subr.mxu0 0.0
        %606 = vmatpush1.msra.mxu0 0.0
        %607 = vmatprep.subr.mxu0 0.0
        %608 = vmatpush1.msra.mxu0 0.0
        %609 = vmatprep.subr.mxu0 0.0
        %610 = vmatpush1.msra.mxu0 0.0
        %611 = vmatprep.subr.mxu0 0.0
        %612 = vmatpush1.msra.mxu0 0.0
        %613 = vmatprep.subr.mxu0 0.0
        %614 = vmatpush1.msra.mxu0 0.0
        %615 = vmatprep.subr.mxu0 0.0
        %616 = vmatpush1.msra.mxu0 0.0
        %617 = vmatprep.subr.mxu0 0.0
        %618 = vmatpush1.msra.mxu0 0.0
        %619 = vmatprep.subr.mxu0 0.0
        %620 = vmatpush1.msra.mxu0 0.0
        %621 = vmatprep.subr.mxu0 0.0
        %622 = vmatpush1.msra.mxu0 0.0
        %623 = vmatprep.subr.mxu0 0.0
        %624 = vmatpush1.msra.mxu0 0.0
        %625 = vmatprep.mubr.f32.mxu0 0.0
        %626 = vmatmul.mubr.f32.gmra.mrb[0].mxu0 %v559
        %v627 = vpop.f32.mrb[0].mxu0
        %v628 = vadd.f32 0.0, %v627
        %v629 = vpop.f32.mrb[0].mxu0
        %v630 = vadd.f32 0.0, %v629
        %631 = vdwg.mxu0
        %632 = vrot.lane.b32.xlu0 %v543, 64
        %v633 = vpop.permute.xlu0 %632
        %634 = vrot.lane.b32.xlu0 %v544, 64
        %v635 = vpop.permute.xlu0 %634
        %vm636 = vcmask 523264
        %v637 = vsel %vm636, %v633, %v635
        %v641 = vsel %vm557, %v542, 0
        %643 = vmatprep.subr.mxu0 %v635
        %644 = vmatpush1.msra.mxu0 %v637
        %645 = vmatprep.subr.mxu0 0.0
        %646 = vmatpush1.msra.mxu0 0.0
        %647 = vmatprep.subr.mxu0 0.0
        %648 = vmatpush1.msra.mxu0 0.0
        %649 = vmatprep.subr.mxu0 0.0
        %650 = vmatpush1.msra.mxu0 0.0
        %651 = vmatprep.subr.mxu0 0.0
        %652 = vmatpush1.msra.mxu0 0.0
        %653 = vmatprep.subr.mxu0 0.0
        %654 = vmatpush1.msra.mxu0 0.0
        %655 = vmatprep.subr.mxu0 0.0
        %656 = vmatpush1.msra.mxu0 0.0
        %657 = vmatprep.subr.mxu0 0.0
        %658 = vmatpush1.msra.mxu0 0.0
        %659 = vmatprep.subr.mxu0 0.0
        %660 = vmatpush1.msra.mxu0 0.0
        %661 = vmatprep.subr.mxu0 0.0
        %662 = vmatpush1.msra.mxu0 0.0
        %663 = vmatprep.subr.mxu0 0.0
        %664 = vmatpush1.msra.mxu0 0.0
        %665 = vmatprep.subr.mxu0 0.0
        %666 = vmatpush1.msra.mxu0 0.0
        %667 = vmatprep.subr.mxu0 0.0
        %668 = vmatpush1.msra.mxu0 0.0
        %669 = vmatprep.subr.mxu0 0.0
        %670 = vmatpush1.msra.mxu0 0.0
        %671 = vmatprep.subr.mxu0 0.0
        %672 = vmatpush1.msra.mxu0 0.0
        %673 = vmatprep.subr.mxu0 0.0
        %674 = vmatpush1.msra.mxu0 0.0
        %675 = vmatprep.subr.mxu0 0.0
        %676 = vmatpush1.msra.mxu0 0.0
        %677 = vmatprep.subr.mxu0 0.0
        %678 = vmatpush1.msra.mxu0 0.0
        %679 = vmatprep.subr.mxu0 0.0
        %680 = vmatpush1.msra.mxu0 0.0
        %681 = vmatprep.subr.mxu0 0.0
        %682 = vmatpush1.msra.mxu0 0.0
        %683 = vmatprep.subr.mxu0 0.0
        %684 = vmatpush1.msra.mxu0 0.0
        %685 = vmatprep.subr.mxu0 0.0
        %686 = vmatpush1.msra.mxu0 0.0
        %687 = vmatprep.subr.mxu0 0.0
        %688 = vmatpush1.msra.mxu0 0.0
        %689 = vmatprep.subr.mxu0 0.0
        %690 = vmatpush1.msra.mxu0 0.0
        %691 = vmatprep.subr.mxu0 0.0
        %692 = vmatpush1.msra.mxu0 0.0
        %693 = vmatprep.subr.mxu0 0.0
        %694 = vmatpush1.msra.mxu0 0.0
        %695 = vmatprep.subr.mxu0 0.0
        %696 = vmatpush1.msra.mxu0 0.0
        %697 = vmatprep.subr.mxu0 0.0
        %698 = vmatpush1.msra.mxu0 0.0
        %699 = vmatprep.subr.mxu0 0.0
        %700 = vmatpush1.msra.mxu0 0.0
        %701 = vmatprep.subr.mxu0 0.0
        %702 = vmatpush1.msra.mxu0 0.0
        %703 = vmatprep.subr.mxu0 0.0
        %704 = vmatpush1.msra.mxu0 0.0
        %705 = vmatprep.subr.mxu0 0.0
        %706 = vmatpush1.msra.mxu0 0.0
        %707 = vmatprep.mubr.f32.mxu0 0.0
        %708 = vmatmul.mubr.f32.gmra.mrb[0].mxu0 %v641
        %v709 = vpop.f32.mrb[0].mxu0
        %v710 = vadd.f32 %v628, %v709
        %v711 = vpop.f32.mrb[0].mxu0
        %v712 = vadd.f32 %v630, %v711
        %713 = vdwg.mxu0
        %s714 = scalar_lea.vmem %s1, 16
        %v715 = vld [vmem:[%s714] sm:$0xff]
        %716 = vrot.lane.b32.xlu0 %v543, 49
        %v717 = vpop.permute.xlu0 %716
        %718 = vrot.lane.b32.xlu0 %v544, 49
        %v719 = vpop.permute.xlu0 %718
        %vm720 = vcmask 400384
        %v721 = vsel %vm720, %v717, %v719
        %v725 = vsel %vm557, %v715, 0
        %727 = vmatprep.subr.mxu0 %v719
        %728 = vmatpush1.msra.mxu0 %v721
        %729 = vmatprep.subr.mxu0 0.0
        %730 = vmatpush1.msra.mxu0 0.0
        %731 = vmatprep.subr.mxu0 0.0
        %732 = vmatpush1.msra.mxu0 0.0
        %733 = vmatprep.subr.mxu0 0.0
        %734 = vmatpush1.msra.mxu0 0.0
        %735 = vmatprep.subr.mxu0 0.0
        %736 = vmatpush1.msra.mxu0 0.0
        %737 = vmatprep.subr.mxu0 0.0
        %738 = vmatpush1.msra.mxu0 0.0
        %739 = vmatprep.subr.mxu0 0.0
        %740 = vmatpush1.msra.mxu0 0.0
        %741 = vmatprep.subr.mxu0 0.0
        %742 = vmatpush1.msra.mxu0 0.0
        %743 = vmatprep.subr.mxu0 0.0
        %744 = vmatpush1.msra.mxu0 0.0
        %745 = vmatprep.subr.mxu0 0.0
        %746 = vmatpush1.msra.mxu0 0.0
        %747 = vmatprep.subr.mxu0 0.0
        %748 = vmatpush1.msra.mxu0 0.0
        %749 = vmatprep.subr.mxu0 0.0
        %750 = vmatpush1.msra.mxu0 0.0
        %751 = vmatprep.subr.mxu0 0.0
        %752 = vmatpush1.msra.mxu0 0.0
        %753 = vmatprep.subr.mxu0 0.0
        %754 = vmatpush1.msra.mxu0 0.0
        %755 = vmatprep.subr.mxu0 0.0
        %756 = vmatpush1.msra.mxu0 0.0
        %757 = vmatprep.subr.mxu0 0.0
        %758 = vmatpush1.msra.mxu0 0.0
        %759 = vmatprep.subr.mxu0 0.0
        %760 = vmatpush1.msra.mxu0 0.0
        %761 = vmatprep.subr.mxu0 0.0
        %762 = vmatpush1.msra.mxu0 0.0
        %763 = vmatprep.subr.mxu0 0.0
        %764 = vmatpush1.msra.mxu0 0.0
        %765 = vmatprep.subr.mxu0 0.0
        %766 = vmatpush1.msra.mxu0 0.0
        %767 = vmatprep.subr.mxu0 0.0
        %768 = vmatpush1.msra.mxu0 0.0
        %769 = vmatprep.subr.mxu0 0.0
        %770 = vmatpush1.msra.mxu0 0.0
        %771 = vmatprep.subr.mxu0 0.0
        %772 = vmatpush1.msra.mxu0 0.0
        %773 = vmatprep.subr.mxu0 0.0
        %774 = vmatpush1.msra.mxu0 0.0
        %775 = vmatprep.subr.mxu0 0.0
        %776 = vmatpush1.msra.mxu0 0.0
        %777 = vmatprep.subr.mxu0 0.0
        %778 = vmatpush1.msra.mxu0 0.0
        %779 = vmatprep.subr.mxu0 0.0
        %780 = vmatpush1.msra.mxu0 0.0
        %781 = vmatprep.subr.mxu0 0.0
        %782 = vmatpush1.msra.mxu0 0.0
        %783 = vmatprep.subr.mxu0 0.0
        %784 = vmatpush1.msra.mxu0 0.0
        %785 = vmatprep.subr.mxu0 0.0
        %786 = vmatpush1.msra.mxu0 0.0
        %787 = vmatprep.subr.mxu0 0.0
        %788 = vmatpush1.msra.mxu0 0.0
        %789 = vmatprep.subr.mxu0 0.0
        %790 = vmatpush1.msra.mxu0 0.0
        %791 = vmatprep.mubr.f32.mxu0 0.0
        %792 = vmatmul.mubr.f32.gmra.mrb[0].mxu0 %v725
        %v793 = vpop.f32.mrb[0].mxu0
        %v794 = vadd.f32 0.0, %v793
        %v795 = vpop.f32.mrb[0].mxu0
        %v796 = vadd.f32 0.0, %v795
        %797 = vdwg.mxu0
        %v798 = vadd.f32 %v710, %v794
        %v799 = vadd.f32 %v712, %v796
        %s800 = scalar_lea.vmem %s1, 24
        %v801 = vld [vmem:[%s800] sm:$0xff]
        %802 = vrot.lane.b32.xlu0 %v543, 48
        %v803 = vpop.permute.xlu0 %802
        %804 = vrot.lane.b32.xlu0 %v544, 48
        %v805 = vpop.permute.xlu0 %804
        %vm806 = vcmask 392192
        %v807 = vsel %vm806, %v803, %v805
        %v811 = vsel %vm557, %v801, 0
        %813 = vmatprep.subr.mxu0 %v805
        %814 = vmatpush1.msra.mxu0 %v807
        %815 = vmatprep.subr.mxu0 0.0
        %816 = vmatpush1.msra.mxu0 0.0
        %817 = vmatprep.subr.mxu0 0.0
        %818 = vmatpush1.msra.mxu0 0.0
        %819 = vmatprep.subr.mxu0 0.0
        %820 = vmatpush1.msra.mxu0 0.0
        %821 = vmatprep.subr.mxu0 0.0
        %822 = vmatpush1.msra.mxu0 0.0
        %823 = vmatprep.subr.mxu0 0.0
        %824 = vmatpush1.msra.mxu0 0.0
        %825 = vmatprep.subr.mxu0 0.0
        %826 = vmatpush1.msra.mxu0 0.0
        %827 = vmatprep.subr.mxu0 0.0
        %828 = vmatpush1.msra.mxu0 0.0
        %829 = vmatprep.subr.mxu0 0.0
        %830 = vmatpush1.msra.mxu0 0.0
        %831 = vmatprep.subr.mxu0 0.0
        %832 = vmatpush1.msra.mxu0 0.0
        %833 = vmatprep.subr.mxu0 0.0
        %834 = vmatpush1.msra.mxu0 0.0
        %835 = vmatprep.subr.mxu0 0.0
        %836 = vmatpush1.msra.mxu0 0.0
        %837 = vmatprep.subr.mxu0 0.0
        %838 = vmatpush1.msra.mxu0 0.0
        %839 = vmatprep.subr.mxu0 0.0
        %840 = vmatpush1.msra.mxu0 0.0
        %841 = vmatprep.subr.mxu0 0.0
        %842 = vmatpush1.msra.mxu0 0.0
        %843 = vmatprep.subr.mxu0 0.0
        %844 = vmatpush1.msra.mxu0 0.0
        %845 = vmatprep.subr.mxu0 0.0
        %846 = vmatpush1.msra.mxu0 0.0
        %847 = vmatprep.subr.mxu0 0.0
        %848 = vmatpush1.msra.mxu0 0.0
        %849 = vmatprep.subr.mxu0 0.0
        %850 = vmatpush1.msra.mxu0 0.0
        %851 = vmatprep.subr.mxu0 0.0
        %852 = vmatpush1.msra.mxu0 0.0
        %853 = vmatprep.subr.mxu0 0.0
        %854 = vmatpush1.msra.mxu0 0.0
        %855 = vmatprep.subr.mxu0 0.0
        %856 = vmatpush1.msra.mxu0 0.0
        %857 = vmatprep.subr.mxu0 0.0
        %858 = vmatpush1.msra.mxu0 0.0
        %859 = vmatprep.subr.mxu0 0.0
        %860 = vmatpush1.msra.mxu0 0.0
        %861 = vmatprep.subr.mxu0 0.0
        %862 = vmatpush1.msra.mxu0 0.0
        %863 = vmatprep.subr.mxu0 0.0
        %864 = vmatpush1.msra.mxu0 0.0
        %865 = vmatprep.subr.mxu0 0.0
        %866 = vmatpush1.msra.mxu0 0.0
        %867 = vmatprep.subr.mxu0 0.0
        %868 = vmatpush1.msra.mxu0 0.0
        %869 = vmatprep.subr.mxu0 0.0
        %870 = vmatpush1.msra.mxu0 0.0
        %871 = vmatprep.subr.mxu0 0.0
        %872 = vmatpush1.msra.mxu0 0.0
        %873 = vmatprep.subr.mxu0 0.0
        %874 = vmatpush1.msra.mxu0 0.0
        %875 = vmatprep.subr.mxu0 0.0
        %876 = vmatpush1.msra.mxu0 0.0
        %877 = vmatprep.mubr.f32.mxu0 0.0
        %878 = vmatmul.mubr.f32.gmra.mrb[0].mxu0 %v811
        %v879 = vpop.f32.mrb[0].mxu0
        %v880 = vadd.f32 0.0, %v879
        %v881 = vpop.f32.mrb[0].mxu0
        %v882 = vadd.f32 0.0, %v881
        %883 = vdwg.mxu0
        %v884 = vadd.f32 %v798, %v880
        %v885 = vadd.f32 %v799, %v882
        %v886 = vld [vmem:[%s2] sm:$0xff]
        %888 = vset.pattern.permute.xlu0 0
        %889 = vperm.xlu0 %888, %v886
        %v890 = vpop.permute.xlu0 %889
        %v892 = vadd.f32 %v884, %v890
        %v893 = vadd.f32 %v885, %v890
        %v894 = vmax.f32 %v892, 0.0
        %v895 = vmax.f32 %v893, 0.0
        %v896 = vld [vmem:[%s3] sm:$0x3]
        %v898 = vlaneseq
        %v899 = vshrl.u32 %v898, 7
        %v900 = vsub.s32 0, %v899
        %v901 = vrot.slane %v896, %v900
        %v902 = vlaneseq
        %v903 = vshrl.u32 %v902, 7
        %v904 = vsub.s32 1, %v903
        %v905 = vrot.slane %v896, %v904
        %v908 = vmul.f32 %v894, %v901
        %v909 = vmul.f32 %v895, %v905
        %912 = vrot.lane.b32.xlu0 %v908, 64
        %v913 = vpop.permute.xlu0 %912
        %914 = vrot.lane.b32.xlu0 %v909, 64
        %v915 = vpop.permute.xlu0 %914
        %v916 = vsel %vm636, %v913, %v915
        %vm919 = vcmask 1048064
        %920 = vst.msk [vmem:[#allocation3] sm:$0xff] %vm919, %v913
        %vm921 = vcmask 580608
        %922 = vst.msk [vmem:[#allocation3 + $0x8] sm:$0xff] %vm921, %v916
        %923 = vst [vmem:[#allocation2] sm:$0xff] 0.0
        %924 = vst.msk [vmem:[#allocation2 + $0x8] sm:$0xff] %vm381, 0.0
        %v925 = vld [vmem:[#allocation6] sm:$0xff]
        %v926 = vld [vmem:[#allocation3] sm:$0xff]
        %v927 = vld [vmem:[#allocation3 + $0x8] sm:$0xff]
        %s928 = scalar_lea.vmem [#allocation6], 8
        %v929 = vld [vmem:[%s928] sm:$0xff]
        %932 = vrot.lane.b32.xlu0 %v926, 95
        %v933 = vpop.permute.xlu0 %932
        %934 = vrot.lane.b32.xlu0 %v927, 95
        %v935 = vpop.permute.xlu0 %934
        %vm936 = vcmask 777216
        %v937 = vsel %vm936, %v933, %v935
        %v941 = vsel %vm557, %v929, 0
        %943 = vmatprep.subr.mxu0 %v935
        %944 = vmatpush1.msra.mxu0 %v937
        %945 = vmatprep.subr.mxu0 0.0
        %946 = vmatpush1.msra.mxu0 0.0
        %947 = vmatprep.subr.mxu0 0.0
        %948 = vmatpush1.msra.mxu0 0.0
        %949 = vmatprep.subr.mxu0 0.0
        %950 = vmatpush1.msra.mxu0 0.0
        %951 = vmatprep.subr.mxu0 0.0
        %952 = vmatpush1.msra.mxu0 0.0
        %953 = vmatprep.subr.mxu0 0.0
        %954 = vmatpush1.msra.mxu0 0.0
        %955 = vmatprep.subr.mxu0 0.0
        %956 = vmatpush1.msra.mxu0 0.0
        %957 = vmatprep.subr.mxu0 0.0
        %958 = vmatpush1.msra.mxu0 0.0
        %959 = vmatprep.subr.mxu0 0.0
        %960 = vmatpush1.msra.mxu0 0.0
        %961 = vmatprep.subr.mxu0 0.0
        %962 = vmatpush1.msra.mxu0 0.0
        %963 = vmatprep.subr.mxu0 0.0
        %964 = vmatpush1.msra.mxu0 0.0
        %965 = vmatprep.subr.mxu0 0.0
        %966 = vmatpush1.msra.mxu0 0.0
        %967 = vmatprep.subr.mxu0 0.0
        %968 = vmatpush1.msra.mxu0 0.0
        %969 = vmatprep.subr.mxu0 0.0
        %970 = vmatpush1.msra.mxu0 0.0
        %971 = vmatprep.subr.mxu0 0.0
        %972 = vmatpush1.msra.mxu0 0.0
        %973 = vmatprep.subr.mxu0 0.0
        %974 = vmatpush1.msra.mxu0 0.0
        %975 = vmatprep.subr.mxu0 0.0
        %976 = vmatpush1.msra.mxu0 0.0
        %977 = vmatprep.subr.mxu0 0.0
        %978 = vmatpush1.msra.mxu0 0.0
        %979 = vmatprep.subr.mxu0 0.0
        %980 = vmatpush1.msra.mxu0 0.0
        %981 = vmatprep.subr.mxu0 0.0
        %982 = vmatpush1.msra.mxu0 0.0
        %983 = vmatprep.subr.mxu0 0.0
        %984 = vmatpush1.msra.mxu0 0.0
        %985 = vmatprep.subr.mxu0 0.0
        %986 = vmatpush1.msra.mxu0 0.0
        %987 = vmatprep.subr.mxu0 0.0
        %988 = vmatpush1.msra.mxu0 0.0
        %989 = vmatprep.subr.mxu0 0.0
        %990 = vmatpush1.msra.mxu0 0.0
        %991 = vmatprep.subr.mxu0 0.0
        %992 = vmatpush1.msra.mxu0 0.0
        %993 = vmatprep.subr.mxu0 0.0
        %994 = vmatpush1.msra.mxu0 0.0
        %995 = vmatprep.subr.mxu0 0.0
        %996 = vmatpush1.msra.mxu0 0.0
        %997 = vmatprep.subr.mxu0 0.0
        %998 = vmatpush1.msra.mxu0 0.0
        %999 = vmatprep.subr.mxu0 0.0
        %1000 = vmatpush1.msra.mxu0 0.0
        %1001 = vmatprep.subr.mxu0 0.0
        %1002 = vmatpush1.msra.mxu0 0.0
        %1003 = vmatprep.subr.mxu0 0.0
        %1004 = vmatpush1.msra.mxu0 0.0
        %1005 = vmatprep.subr.mxu0 0.0
        %1006 = vmatpush1.msra.mxu0 0.0
        %1007 = vmatprep.mubr.f32.mxu0 0.0
        %1008 = vmatmul.mubr.f32.gmra.mrb[0].mxu0 %v941
        %v1009 = vpop.f32.mrb[0].mxu0
        %v1010 = vadd.f32 0.0, %v1009
        %v1011 = vpop.f32.mrb[0].mxu0
        %v1012 = vadd.f32 0.0, %v1011
        %1013 = vdwg.mxu0
        %1014 = vrot.lane.b32.xlu0 %v926, 96
        %v1015 = vpop.permute.xlu0 %1014
        %1016 = vrot.lane.b32.xlu0 %v927, 96
        %v1017 = vpop.permute.xlu0 %1016
        %vm1018 = vcmask 785408
        %v1019 = vsel %vm1018, %v1015, %v1017
        %v1023 = vsel %vm557, %v925, 0
        %1025 = vmatprep.subr.mxu0 %v1017
        %1026 = vmatpush1.msra.mxu0 %v1019
        %1027 = vmatprep.subr.mxu0 0.0
        %1028 = vmatpush1.msra.mxu0 0.0
        %1029 = vmatprep.subr.mxu0 0.0
        %1030 = vmatpush1.msra.mxu0 0.0
        %1031 = vmatprep.subr.mxu0 0.0
        %1032 = vmatpush1.msra.mxu0 0.0
        %1033 = vmatprep.subr.mxu0 0.0
        %1034 = vmatpush1.msra.mxu0 0.0
        %1035 = vmatprep.subr.mxu0 0.0
        %1036 = vmatpush1.msra.mxu0 0.0
        %1037 = vmatprep.subr.mxu0 0.0
        %1038 = vmatpush1.msra.mxu0 0.0
        %1039 = vmatprep.subr.mxu0 0.0
        %1040 = vmatpush1.msra.mxu0 0.0
        %1041 = vmatprep.subr.mxu0 0.0
        %1042 = vmatpush1.msra.mxu0 0.0
        %1043 = vmatprep.subr.mxu0 0.0
        %1044 = vmatpush1.msra.mxu0 0.0
        %1045 = vmatprep.subr.mxu0 0.0
        %1046 = vmatpush1.msra.mxu0 0.0
        %1047 = vmatprep.subr.mxu0 0.0
        %1048 = vmatpush1.msra.mxu0 0.0
        %1049 = vmatprep.subr.mxu0 0.0
        %1050 = vmatpush1.msra.mxu0 0.0
        %1051 = vmatprep.subr.mxu0 0.0
        %1052 = vmatpush1.msra.mxu0 0.0
        %1053 = vmatprep.subr.mxu0 0.0
        %1054 = vmatpush1.msra.mxu0 0.0
        %1055 = vmatprep.subr.mxu0 0.0
        %1056 = vmatpush1.msra.mxu0 0.0
        %1057 = vmatprep.subr.mxu0 0.0
        %1058 = vmatpush1.msra.mxu0 0.0
        %1059 = vmatprep.subr.mxu0 0.0
        %1060 = vmatpush1.msra.mxu0 0.0
        %1061 = vmatprep.subr.mxu0 0.0
        %1062 = vmatpush1.msra.mxu0 0.0
        %1063 = vmatprep.subr.mxu0 0.0
        %1064 = vmatpush1.msra.mxu0 0.0
        %1065 = vmatprep.subr.mxu0 0.0
        %1066 = vmatpush1.msra.mxu0 0.0
        %1067 = vmatprep.subr.mxu0 0.0
        %1068 = vmatpush1.msra.mxu0 0.0
        %1069 = vmatprep.subr.mxu0 0.0
        %1070 = vmatpush1.msra.mxu0 0.0
        %1071 = vmatprep.subr.mxu0 0.0
        %1072 = vmatpush1.msra.mxu0 0.0
        %1073 = vmatprep.subr.mxu0 0.0
        %1074 = vmatpush1.msra.mxu0 0.0
        %1075 = vmatprep.subr.mxu0 0.0
        %1076 = vmatpush1.msra.mxu0 0.0
        %1077 = vmatprep.subr.mxu0 0.0
        %1078 = vmatpush1.msra.mxu0 0.0
        %1079 = vmatprep.subr.mxu0 0.0
        %1080 = vmatpush1.msra.mxu0 0.0
        %1081 = vmatprep.subr.mxu0 0.0
        %1082 = vmatpush1.msra.mxu0 0.0
        %1083 = vmatprep.subr.mxu0 0.0
        %1084 = vmatpush1.msra.mxu0 0.0
        %1085 = vmatprep.subr.mxu0 0.0
        %1086 = vmatpush1.msra.mxu0 0.0
        %1087 = vmatprep.subr.mxu0 0.0
        %1088 = vmatpush1.msra.mxu0 0.0
        %1089 = vmatprep.mubr.f32.mxu0 0.0
        %1090 = vmatmul.mubr.f32.gmra.mrb[0].mxu0 %v1023
        %v1091 = vpop.f32.mrb[0].mxu0
        %v1092 = vadd.f32 %v1010, %v1091
        %v1093 = vpop.f32.mrb[0].mxu0
        %v1094 = vadd.f32 %v1012, %v1093
        %1095 = vdwg.mxu0
        %s1096 = scalar_lea.vmem [#allocation6], 16
        %v1097 = vld [vmem:[%s1096] sm:$0xff]
        %1098 = vrot.lane.b32.xlu0 %v926, 94
        %v1099 = vpop.permute.xlu0 %1098
        %1100 = vrot.lane.b32.xlu0 %v927, 94
        %v1101 = vpop.permute.xlu0 %1100
        %vm1102 = vcmask 769024
        %v1103 = vsel %vm1102, %v1099, %v1101
        %v1107 = vsel %vm557, %v1097, 0
        %1109 = vmatprep.subr.mxu0 %v1101
        %1110 = vmatpush1.msra.mxu0 %v1103
        %1111 = vmatprep.subr.mxu0 0.0
        %1112 = vmatpush1.msra.mxu0 0.0
        %1113 = vmatprep.subr.mxu0 0.0
        %1114 = vmatpush1.msra.mxu0 0.0
        %1115 = vmatprep.subr.mxu0 0.0
        %1116 = vmatpush1.msra.mxu0 0.0
        %1117 = vmatprep.subr.mxu0 0.0
        %1118 = vmatpush1.msra.mxu0 0.0
        %1119 = vmatprep.subr.mxu0 0.0
        %1120 = vmatpush1.msra.mxu0 0.0
        %1121 = vmatprep.subr.mxu0 0.0
        %1122 = vmatpush1.msra.mxu0 0.0
        %1123 = vmatprep.subr.mxu0 0.0
        %1124 = vmatpush1.msra.mxu0 0.0
        %1125 = vmatprep.subr.mxu0 0.0
        %1126 = vmatpush1.msra.mxu0 0.0
        %1127 = vmatprep.subr.mxu0 0.0
        %1128 = vmatpush1.msra.mxu0 0.0
        %1129 = vmatprep.subr.mxu0 0.0
        %1130 = vmatpush1.msra.mxu0 0.0
        %1131 = vmatprep.subr.mxu0 0.0
        %1132 = vmatpush1.msra.mxu0 0.0
        %1133 = vmatprep.subr.mxu0 0.0
        %1134 = vmatpush1.msra.mxu0 0.0
        %1135 = vmatprep.subr.mxu0 0.0
        %1136 = vmatpush1.msra.mxu0 0.0
        %1137 = vmatprep.subr.mxu0 0.0
        %1138 = vmatpush1.msra.mxu0 0.0
        %1139 = vmatprep.subr.mxu0 0.0
        %1140 = vmatpush1.msra.mxu0 0.0
        %1141 = vmatprep.subr.mxu0 0.0
        %1142 = vmatpush1.msra.mxu0 0.0
        %1143 = vmatprep.subr.mxu0 0.0
        %1144 = vmatpush1.msra.mxu0 0.0
        %1145 = vmatprep.subr.mxu0 0.0
        %1146 = vmatpush1.msra.mxu0 0.0
        %1147 = vmatprep.subr.mxu0 0.0
        %1148 = vmatpush1.msra.mxu0 0.0
        %1149 = vmatprep.subr.mxu0 0.0
        %1150 = vmatpush1.msra.mxu0 0.0
        %1151 = vmatprep.subr.mxu0 0.0
        %1152 = vmatpush1.msra.mxu0 0.0
        %1153 = vmatprep.subr.mxu0 0.0
        %1154 = vmatpush1.msra.mxu0 0.0
        %1155 = vmatprep.subr.mxu0 0.0
        %1156 = vmatpush1.msra.mxu0 0.0
        %1157 = vmatprep.subr.mxu0 0.0
        %1158 = vmatpush1.msra.mxu0 0.0
        %1159 = vmatprep.subr.mxu0 0.0
        %1160 = vmatpush1.msra.mxu0 0.0
        %1161 = vmatprep.subr.mxu0 0.0
        %1162 = vmatpush1.msra.mxu0 0.0
        %1163 = vmatprep.subr.mxu0 0.0
        %1164 = vmatpush1.msra.mxu0 0.0
        %1165 = vmatprep.subr.mxu0 0.0
        %1166 = vmatpush1.msra.mxu0 0.0
        %1167 = vmatprep.subr.mxu0 0.0
        %1168 = vmatpush1.msra.mxu0 0.0
        %1169 = vmatprep.subr.mxu0 0.0
        %1170 = vmatpush1.msra.mxu0 0.0
        %1171 = vmatprep.subr.mxu0 0.0
        %1172 = vmatpush1.msra.mxu0 0.0
        %1173 = vmatprep.mubr.f32.mxu0 0.0
        %1174 = vmatmul.mubr.f32.gmra.mrb[0].mxu0 %v1107
        %v1175 = vpop.f32.mrb[0].mxu0
        %v1176 = vadd.f32 0.0, %v1175
        %v1177 = vpop.f32.mrb[0].mxu0
        %v1178 = vadd.f32 0.0, %v1177
        %1179 = vdwg.mxu0
        %v1180 = vadd.f32 %v1092, %v1176
        %v1181 = vadd.f32 %v1094, %v1178
        %s1182 = scalar_lea.vmem [#allocation6], 24
        %v1183 = vld [vmem:[%s1182] sm:$0xff]
        %1184 = vrot.lane.b32.xlu0 %v926, 81
        %v1185 = vpop.permute.xlu0 %1184
        %1186 = vrot.lane.b32.xlu0 %v927, 81
        %v1187 = vpop.permute.xlu0 %1186
        %vm1188 = vcmask 662528
        %v1189 = vsel %vm1188, %v1185, %v1187
        %v1193 = vsel %vm557, %v1183, 0
        %1195 = vmatprep.subr.mxu0 %v1187
        %1196 = vmatpush1.msra.mxu0 %v1189
        %1197 = vmatprep.subr.mxu0 0.0
        %1198 = vmatpush1.msra.mxu0 0.0
        %1199 = vmatprep.subr.mxu0 0.0
        %1200 = vmatpush1.msra.mxu0 0.0
        %1201 = vmatprep.subr.mxu0 0.0
        %1202 = vmatpush1.msra.mxu0 0.0
        %1203 = vmatprep.subr.mxu0 0.0
        %1204 = vmatpush1.msra.mxu0 0.0
        %1205 = vmatprep.subr.mxu0 0.0
        %1206 = vmatpush1.msra.mxu0 0.0
        %1207 = vmatprep.subr.mxu0 0.0
        %1208 = vmatpush1.msra.mxu0 0.0
        %1209 = vmatprep.subr.mxu0 0.0
        %1210 = vmatpush1.msra.mxu0 0.0
        %1211 = vmatprep.subr.mxu0 0.0
        %1212 = vmatpush1.msra.mxu0 0.0
        %1213 = vmatprep.subr.mxu0 0.0
        %1214 = vmatpush1.msra.mxu0 0.0
        %1215 = vmatprep.subr.mxu0 0.0
        %1216 = vmatpush1.msra.mxu0 0.0
        %1217 = vmatprep.subr.mxu0 0.0
        %1218 = vmatpush1.msra.mxu0 0.0
        %1219 = vmatprep.subr.mxu0 0.0
        %1220 = vmatpush1.msra.mxu0 0.0
        %1221 = vmatprep.subr.mxu0 0.0
        %1222 = vmatpush1.msra.mxu0 0.0
        %1223 = vmatprep.subr.mxu0 0.0
        %1224 = vmatpush1.msra.mxu0 0.0
        %1225 = vmatprep.subr.mxu0 0.0
        %1226 = vmatpush1.msra.mxu0 0.0
        %1227 = vmatprep.subr.mxu0 0.0
        %1228 = vmatpush1.msra.mxu0 0.0
        %1229 = vmatprep.subr.mxu0 0.0
        %1230 = vmatpush1.msra.mxu0 0.0
        %1231 = vmatprep.subr.mxu0 0.0
        %1232 = vmatpush1.msra.mxu0 0.0
        %1233 = vmatprep.subr.mxu0 0.0
        %1234 = vmatpush1.msra.mxu0 0.0
        %1235 = vmatprep.subr.mxu0 0.0
        %1236 = vmatpush1.msra.mxu0 0.0
        %1237 = vmatprep.subr.mxu0 0.0
        %1238 = vmatpush1.msra.mxu0 0.0
        %1239 = vmatprep.subr.mxu0 0.0
        %1240 = vmatpush1.msra.mxu0 0.0
        %1241 = vmatprep.subr.mxu0 0.0
        %1242 = vmatpush1.msra.mxu0 0.0
        %1243 = vmatprep.subr.mxu0 0.0
        %1244 = vmatpush1.msra.mxu0 0.0
        %1245 = vmatprep.subr.mxu0 0.0
        %1246 = vmatpush1.msra.mxu0 0.0
        %1247 = vmatprep.subr.mxu0 0.0
        %1248 = vmatpush1.msra.mxu0 0.0
        %1249 = vmatprep.subr.mxu0 0.0
        %1250 = vmatpush1.msra.mxu0 0.0
        %1251 = vmatprep.subr.mxu0 0.0
        %1252 = vmatpush1.msra.mxu0 0.0
        %1253 = vmatprep.subr.mxu0 0.0
        %1254 = vmatpush1.msra.mxu0 0.0
        %1255 = vmatprep.subr.mxu0 0.0
        %1256 = vmatpush1.msra.mxu0 0.0
        %1257 = vmatprep.subr.mxu0 0.0
        %1258 = vmatpush1.msra.mxu0 0.0
        %1259 = vmatprep.mubr.f32.mxu0 0.0
        %1260 = vmatmul.mubr.f32.gmra.mrb[0].mxu0 %v1193
        %v1261 = vpop.f32.mrb[0].mxu0
        %v1262 = vadd.f32 0.0, %v1261
        %v1263 = vpop.f32.mrb[0].mxu0
        %v1264 = vadd.f32 0.0, %v1263
        %1265 = vdwg.mxu0
        %v1266 = vadd.f32 %v1180, %v1262
        %v1267 = vadd.f32 %v1181, %v1264
        %s1268 = scalar_lea.vmem [#allocation6], 32
        %v1269 = vld [vmem:[%s1268] sm:$0xff]
        %1270 = vrot.lane.b32.xlu0 %v926, 80
        %v1271 = vpop.permute.xlu0 %1270
        %1272 = vrot.lane.b32.xlu0 %v927, 80
        %v1273 = vpop.permute.xlu0 %1272
        %vm1274 = vcmask 654336
        %v1275 = vsel %vm1274, %v1271, %v1273
        %v1279 = vsel %vm557, %v1269, 0
        %1281 = vmatprep.subr.mxu0 %v1273
        %1282 = vmatpush1.msra.mxu0 %v1275
        %1283 = vmatprep.subr.mxu0 0.0
        %1284 = vmatpush1.msra.mxu0 0.0
        %1285 = vmatprep.subr.mxu0 0.0
        %1286 = vmatpush1.msra.mxu0 0.0
        %1287 = vmatprep.subr.mxu0 0.0
        %1288 = vmatpush1.msra.mxu0 0.0
        %1289 = vmatprep.subr.mxu0 0.0
        %1290 = vmatpush1.msra.mxu0 0.0
        %1291 = vmatprep.subr.mxu0 0.0
        %1292 = vmatpush1.msra.mxu0 0.0
        %1293 = vmatprep.subr.mxu0 0.0
        %1294 = vmatpush1.msra.mxu0 0.0
        %1295 = vmatprep.subr.mxu0 0.0
        %1296 = vmatpush1.msra.mxu0 0.0
        %1297 = vmatprep.subr.mxu0 0.0
        %1298 = vmatpush1.msra.mxu0 0.0
        %1299 = vmatprep.subr.mxu0 0.0
        %1300 = vmatpush1.msra.mxu0 0.0
        %1301 = vmatprep.subr.mxu0 0.0
        %1302 = vmatpush1.msra.mxu0 0.0
        %1303 = vmatprep.subr.mxu0 0.0
        %1304 = vmatpush1.msra.mxu0 0.0
        %1305 = vmatprep.subr.mxu0 0.0
        %1306 = vmatpush1.msra.mxu0 0.0
        %1307 = vmatprep.subr.mxu0 0.0
        %1308 = vmatpush1.msra.mxu0 0.0
        %1309 = vmatprep.subr.mxu0 0.0
        %1310 = vmatpush1.msra.mxu0 0.0
        %1311 = vmatprep.subr.mxu0 0.0
        %1312 = vmatpush1.msra.mxu0 0.0
        %1313 = vmatprep.subr.mxu0 0.0
        %1314 = vmatpush1.msra.mxu0 0.0
        %1315 = vmatprep.subr.mxu0 0.0
        %1316 = vmatpush1.msra.mxu0 0.0
        %1317 = vmatprep.subr.mxu0 0.0
        %1318 = vmatpush1.msra.mxu0 0.0
        %1319 = vmatprep.subr.mxu0 0.0
        %1320 = vmatpush1.msra.mxu0 0.0
        %1321 = vmatprep.subr.mxu0 0.0
        %1322 = vmatpush1.msra.mxu0 0.0
        %1323 = vmatprep.subr.mxu0 0.0
        %1324 = vmatpush1.msra.mxu0 0.0
        %1325 = vmatprep.subr.mxu0 0.0
        %1326 = vmatpush1.msra.mxu0 0.0
        %1327 = vmatprep.subr.mxu0 0.0
        %1328 = vmatpush1.msra.mxu0 0.0
        %1329 = vmatprep.subr.mxu0 0.0
        %1330 = vmatpush1.msra.mxu0 0.0
        %1331 = vmatprep.subr.mxu0 0.0
        %1332 = vmatpush1.msra.mxu0 0.0
        %1333 = vmatprep.subr.mxu0 0.0
        %1334 = vmatpush1.msra.mxu0 0.0
        %1335 = vmatprep.subr.mxu0 0.0
        %1336 = vmatpush1.msra.mxu0 0.0
        %1337 = vmatprep.subr.mxu0 0.0
        %1338 = vmatpush1.msra.mxu0 0.0
        %1339 = vmatprep.subr.mxu0 0.0
        %1340 = vmatpush1.msra.mxu0 0.0
        %1341 = vmatprep.subr.mxu0 0.0
        %1342 = vmatpush1.msra.mxu0 0.0
        %1343 = vmatprep.subr.mxu0 0.0
        %1344 = vmatpush1.msra.mxu0 0.0
        %1345 = vmatprep.mubr.f32.mxu0 0.0
        %1346 = vmatmul.mubr.f32.gmra.mrb[0].mxu0 %v1279
        %v1347 = vpop.f32.mrb[0].mxu0
        %v1348 = vadd.f32 0.0, %v1347
        %v1349 = vpop.f32.mrb[0].mxu0
        %v1350 = vadd.f32 0.0, %v1349
        %1351 = vdwg.mxu0
        %v1352 = vadd.f32 %v1266, %v1348
        %v1353 = vadd.f32 %v1267, %v1350
        %s1354 = scalar_lea.vmem [#allocation6], 40
        %v1355 = vld [vmem:[%s1354] sm:$0xff]
        %1356 = vrot.lane.b32.xlu0 %v926, 79
        %v1357 = vpop.permute.xlu0 %1356
        %1358 = vrot.lane.b32.xlu0 %v927, 79
        %v1359 = vpop.permute.xlu0 %1358
        %vm1360 = vcmask 646144
        %v1361 = vsel %vm1360, %v1357, %v1359
        %v1365 = vsel %vm557, %v1355, 0
        %1367 = vmatprep.subr.mxu0 %v1359
        %1368 = vmatpush1.msra.mxu0 %v1361
        %1369 = vmatprep.subr.mxu0 0.0
        %1370 = vmatpush1.msra.mxu0 0.0
        %1371 = vmatprep.subr.mxu0 0.0
        %1372 = vmatpush1.msra.mxu0 0.0
        %1373 = vmatprep.subr.mxu0 0.0
        %1374 = vmatpush1.msra.mxu0 0.0
        %1375 = vmatprep.subr.mxu0 0.0
        %1376 = vmatpush1.msra.mxu0 0.0
        %1377 = vmatprep.subr.mxu0 0.0
        %1378 = vmatpush1.msra.mxu0 0.0
        %1379 = vmatprep.subr.mxu0 0.0
        %1380 = vmatpush1.msra.mxu0 0.0
        %1381 = vmatprep.subr.mxu0 0.0
        %1382 = vmatpush1.msra.mxu0 0.0
        %1383 = vmatprep.subr.mxu0 0.0
        %1384 = vmatpush1.msra.mxu0 0.0
        %1385 = vmatprep.subr.mxu0 0.0
        %1386 = vmatpush1.msra.mxu0 0.0
        %1387 = vmatprep.subr.mxu0 0.0
        %1388 = vmatpush1.msra.mxu0 0.0
        %1389 = vmatprep.subr.mxu0 0.0
        %1390 = vmatpush1.msra.mxu0 0.0
        %1391 = vmatprep.subr.mxu0 0.0
        %1392 = vmatpush1.msra.mxu0 0.0
        %1393 = vmatprep.subr.mxu0 0.0
        %1394 = vmatpush1.msra.mxu0 0.0
        %1395 = vmatprep.subr.mxu0 0.0
        %1396 = vmatpush1.msra.mxu0 0.0
        %1397 = vmatprep.subr.mxu0 0.0
        %1398 = vmatpush1.msra.mxu0 0.0
        %1399 = vmatprep.subr.mxu0 0.0
        %1400 = vmatpush1.msra.mxu0 0.0
        %1401 = vmatprep.subr.mxu0 0.0
        %1402 = vmatpush1.msra.mxu0 0.0
        %1403 = vmatprep.subr.mxu0 0.0
        %1404 = vmatpush1.msra.mxu0 0.0
        %1405 = vmatprep.subr.mxu0 0.0
        %1406 = vmatpush1.msra.mxu0 0.0
        %1407 = vmatprep.subr.mxu0 0.0
        %1408 = vmatpush1.msra.mxu0 0.0
        %1409 = vmatprep.subr.mxu0 0.0
        %1410 = vmatpush1.msra.mxu0 0.0
        %1411 = vmatprep.subr.mxu0 0.0
        %1412 = vmatpush1.msra.mxu0 0.0
        %1413 = vmatprep.subr.mxu0 0.0
        %1414 = vmatpush1.msra.mxu0 0.0
        %1415 = vmatprep.subr.mxu0 0.0
        %1416 = vmatpush1.msra.mxu0 0.0
        %1417 = vmatprep.subr.mxu0 0.0
        %1418 = vmatpush1.msra.mxu0 0.0
        %1419 = vmatprep.subr.mxu0 0.0
        %1420 = vmatpush1.msra.mxu0 0.0
        %1421 = vmatprep.subr.mxu0 0.0
        %1422 = vmatpush1.msra.mxu0 0.0
        %1423 = vmatprep.subr.mxu0 0.0
        %1424 = vmatpush1.msra.mxu0 0.0
        %1425 = vmatprep.subr.mxu0 0.0
        %1426 = vmatpush1.msra.mxu0 0.0
        %1427 = vmatprep.subr.mxu0 0.0
        %1428 = vmatpush1.msra.mxu0 0.0
        %1429 = vmatprep.subr.mxu0 0.0
        %1430 = vmatpush1.msra.mxu0 0.0
        %1431 = vmatprep.mubr.f32.mxu0 0.0
        %1432 = vmatmul.mubr.f32.gmra.mrb[0].mxu0 %v1365
        %v1433 = vpop.f32.mrb[0].mxu0
        %v1434 = vadd.f32 0.0, %v1433
        %v1435 = vpop.f32.mrb[0].mxu0
        %v1436 = vadd.f32 0.0, %v1435
        %1437 = vdwg.mxu0
        %v1438 = vadd.f32 %v1352, %v1434
        %v1439 = vadd.f32 %v1353, %v1436
        %s1440 = scalar_lea.vmem [#allocation6], 48
        %v1441 = vld [vmem:[%s1440] sm:$0xff]
        %1442 = vrot.lane.b32.xlu0 %v926, 66
        %v1443 = vpop.permute.xlu0 %1442
        %1444 = vrot.lane.b32.xlu0 %v927, 66
        %v1445 = vpop.permute.xlu0 %1444
        %vm1446 = vcmask 539648
        %v1447 = vsel %vm1446, %v1443, %v1445
        %v1451 = vsel %vm557, %v1441, 0
        %1453 = vmatprep.subr.mxu0 %v1445
        %1454 = vmatpush1.msra.mxu0 %v1447
        %1455 = vmatprep.subr.mxu0 0.0
        %1456 = vmatpush1.msra.mxu0 0.0
        %1457 = vmatprep.subr.mxu0 0.0
        %1458 = vmatpush1.msra.mxu0 0.0
        %1459 = vmatprep.subr.mxu0 0.0
        %1460 = vmatpush1.msra.mxu0 0.0
        %1461 = vmatprep.subr.mxu0 0.0
        %1462 = vmatpush1.msra.mxu0 0.0
        %1463 = vmatprep.subr.mxu0 0.0
        %1464 = vmatpush1.msra.mxu0 0.0
        %1465 = vmatprep.subr.mxu0 0.0
        %1466 = vmatpush1.msra.mxu0 0.0
        %1467 = vmatprep.subr.mxu0 0.0
        %1468 = vmatpush1.msra.mxu0 0.0
        %1469 = vmatprep.subr.mxu0 0.0
        %1470 = vmatpush1.msra.mxu0 0.0
        %1471 = vmatprep.subr.mxu0 0.0
        %1472 = vmatpush1.msra.mxu0 0.0
        %1473 = vmatprep.subr.mxu0 0.0
        %1474 = vmatpush1.msra.mxu0 0.0
        %1475 = vmatprep.subr.mxu0 0.0
        %1476 = vmatpush1.msra.mxu0 0.0
        %1477 = vmatprep.subr.mxu0 0.0
        %1478 = vmatpush1.msra.mxu0 0.0
        %1479 = vmatprep.subr.mxu0 0.0
        %1480 = vmatpush1.msra.mxu0 0.0
        %1481 = vmatprep.subr.mxu0 0.0
        %1482 = vmatpush1.msra.mxu0 0.0
        %1483 = vmatprep.subr.mxu0 0.0
        %1484 = vmatpush1.msra.mxu0 0.0
        %1485 = vmatprep.subr.mxu0 0.0
        %1486 = vmatpush1.msra.mxu0 0.0
        %1487 = vmatprep.subr.mxu0 0.0
        %1488 = vmatpush1.msra.mxu0 0.0
        %1489 = vmatprep.subr.mxu0 0.0
        %1490 = vmatpush1.msra.mxu0 0.0
        %1491 = vmatprep.subr.mxu0 0.0
        %1492 = vmatpush1.msra.mxu0 0.0
        %1493 = vmatprep.subr.mxu0 0.0
        %1494 = vmatpush1.msra.mxu0 0.0
        %1495 = vmatprep.subr.mxu0 0.0
        %1496 = vmatpush1.msra.mxu0 0.0
        %1497 = vmatprep.subr.mxu0 0.0
        %1498 = vmatpush1.msra.mxu0 0.0
        %1499 = vmatprep.subr.mxu0 0.0
        %1500 = vmatpush1.msra.mxu0 0.0
        %1501 = vmatprep.subr.mxu0 0.0
        %1502 = vmatpush1.msra.mxu0 0.0
        %1503 = vmatprep.subr.mxu0 0.0
        %1504 = vmatpush1.msra.mxu0 0.0
        %1505 = vmatprep.subr.mxu0 0.0
        %1506 = vmatpush1.msra.mxu0 0.0
        %1507 = vmatprep.subr.mxu0 0.0
        %1508 = vmatpush1.msra.mxu0 0.0
        %1509 = vmatprep.subr.mxu0 0.0
        %1510 = vmatpush1.msra.mxu0 0.0
        %1511 = vmatprep.subr.mxu0 0.0
        %1512 = vmatpush1.msra.mxu0 0.0
        %1513 = vmatprep.subr.mxu0 0.0
        %1514 = vmatpush1.msra.mxu0 0.0
        %1515 = vmatprep.subr.mxu0 0.0
        %1516 = vmatpush1.msra.mxu0 0.0
        %1517 = vmatprep.mubr.f32.mxu0 0.0
        %1518 = vmatmul.mubr.f32.gmra.mrb[0].mxu0 %v1451
        %v1519 = vpop.f32.mrb[0].mxu0
        %v1520 = vadd.f32 0.0, %v1519
        %v1521 = vpop.f32.mrb[0].mxu0
        %v1522 = vadd.f32 0.0, %v1521
        %1523 = vdwg.mxu0
        %v1524 = vadd.f32 %v1438, %v1520
        %v1525 = vadd.f32 %v1439, %v1522
        %s1526 = scalar_lea.vmem [#allocation6], 56
        %v1527 = vld [vmem:[%s1526] sm:$0xff]
        %1528 = vrot.lane.b32.xlu0 %v926, 65
        %v1529 = vpop.permute.xlu0 %1528
        %1530 = vrot.lane.b32.xlu0 %v927, 65
        %v1531 = vpop.permute.xlu0 %1530
        %vm1532 = vcmask 531456
        %v1533 = vsel %vm1532, %v1529, %v1531
        %v1537 = vsel %vm557, %v1527, 0
        %1539 = vmatprep.subr.mxu0 %v1531
        %1540 = vmatpush1.msra.mxu0 %v1533
        %1541 = vmatprep.subr.mxu0 0.0
        %1542 = vmatpush1.msra.mxu0 0.0
        %1543 = vmatprep.subr.mxu0 0.0
        %1544 = vmatpush1.msra.mxu0 0.0
        %1545 = vmatprep.subr.mxu0 0.0
        %1546 = vmatpush1.msra.mxu0 0.0
        %1547 = vmatprep.subr.mxu0 0.0
        %1548 = vmatpush1.msra.mxu0 0.0
        %1549 = vmatprep.subr.mxu0 0.0
        %1550 = vmatpush1.msra.mxu0 0.0
        %1551 = vmatprep.subr.mxu0 0.0
        %1552 = vmatpush1.msra.mxu0 0.0
        %1553 = vmatprep.subr.mxu0 0.0
        %1554 = vmatpush1.msra.mxu0 0.0
        %1555 = vmatprep.subr.mxu0 0.0
        %1556 = vmatpush1.msra.mxu0 0.0
        %1557 = vmatprep.subr.mxu0 0.0
        %1558 = vmatpush1.msra.mxu0 0.0
        %1559 = vmatprep.subr.mxu0 0.0
        %1560 = vmatpush1.msra.mxu0 0.0
        %1561 = vmatprep.subr.mxu0 0.0
        %1562 = vmatpush1.msra.mxu0 0.0
        %1563 = vmatprep.subr.mxu0 0.0
        %1564 = vmatpush1.msra.mxu0 0.0
        %1565 = vmatprep.subr.mxu0 0.0
        %1566 = vmatpush1.msra.mxu0 0.0
        %1567 = vmatprep.subr.mxu0 0.0
        %1568 = vmatpush1.msra.mxu0 0.0
        %1569 = vmatprep.subr.mxu0 0.0
        %1570 = vmatpush1.msra.mxu0 0.0
        %1571 = vmatprep.subr.mxu0 0.0
        %1572 = vmatpush1.msra.mxu0 0.0
        %1573 = vmatprep.subr.mxu0 0.0
        %1574 = vmatpush1.msra.mxu0 0.0
        %1575 = vmatprep.subr.mxu0 0.0
        %1576 = vmatpush1.msra.mxu0 0.0
        %1577 = vmatprep.subr.mxu0 0.0
        %1578 = vmatpush1.msra.mxu0 0.0
        %1579 = vmatprep.subr.mxu0 0.0
        %1580 = vmatpush1.msra.mxu0 0.0
        %1581 = vmatprep.subr.mxu0 0.0
        %1582 = vmatpush1.msra.mxu0 0.0
        %1583 = vmatprep.subr.mxu0 0.0
        %1584 = vmatpush1.msra.mxu0 0.0
        %1585 = vmatprep.subr.mxu0 0.0
        %1586 = vmatpush1.msra.mxu0 0.0
        %1587 = vmatprep.subr.mxu0 0.0
        %1588 = vmatpush1.msra.mxu0 0.0
        %1589 = vmatprep.subr.mxu0 0.0
        %1590 = vmatpush1.msra.mxu0 0.0
        %1591 = vmatprep.subr.mxu0 0.0
        %1592 = vmatpush1.msra.mxu0 0.0
        %1593 = vmatprep.subr.mxu0 0.0
        %1594 = vmatpush1.msra.mxu0 0.0
        %1595 = vmatprep.subr.mxu0 0.0
        %1596 = vmatpush1.msra.mxu0 0.0
        %1597 = vmatprep.subr.mxu0 0.0
        %1598 = vmatpush1.msra.mxu0 0.0
        %1599 = vmatprep.subr.mxu0 0.0
        %1600 = vmatpush1.msra.mxu0 0.0
        %1601 = vmatprep.subr.mxu0 0.0
        %1602 = vmatpush1.msra.mxu0 0.0
        %1603 = vmatprep.mubr.f32.mxu0 0.0
        %1604 = vmatmul.mubr.f32.gmra.mrb[0].mxu0 %v1537
        %v1605 = vpop.f32.mrb[0].mxu0
        %v1606 = vadd.f32 0.0, %v1605
        %v1607 = vpop.f32.mrb[0].mxu0
        %v1608 = vadd.f32 0.0, %v1607
        %1609 = vdwg.mxu0
        %v1610 = vadd.f32 %v1524, %v1606
        %v1611 = vadd.f32 %v1525, %v1608
        %s1612 = scalar_lea.vmem [#allocation6], 64
        %v1613 = vld [vmem:[%s1612] sm:$0xff]
        %1614 = vrot.lane.b32.xlu0 %v926, 64
        %v1615 = vpop.permute.xlu0 %1614
        %1616 = vrot.lane.b32.xlu0 %v927, 64
        %v1617 = vpop.permute.xlu0 %1616
        %v1618 = vsel %vm636, %v1615, %v1617
        %v1622 = vsel %vm557, %v1613, 0
        %1624 = vmatprep.subr.mxu0 %v1617
        %1625 = vmatpush1.msra.mxu0 %v1618
        %1626 = vmatprep.subr.mxu0 0.0
        %1627 = vmatpush1.msra.mxu0 0.0
        %1628 = vmatprep.subr.mxu0 0.0
        %1629 = vmatpush1.msra.mxu0 0.0
        %1630 = vmatprep.subr.mxu0 0.0
        %1631 = vmatpush1.msra.mxu0 0.0
        %1632 = vmatprep.subr.mxu0 0.0
        %1633 = vmatpush1.msra.mxu0 0.0
        %1634 = vmatprep.subr.mxu0 0.0
        %1635 = vmatpush1.msra.mxu0 0.0
        %1636 = vmatprep.subr.mxu0 0.0
        %1637 = vmatpush1.msra.mxu0 0.0
        %1638 = vmatprep.subr.mxu0 0.0
        %1639 = vmatpush1.msra.mxu0 0.0
        %1640 = vmatprep.subr.mxu0 0.0
        %1641 = vmatpush1.msra.mxu0 0.0
        %1642 = vmatprep.subr.mxu0 0.0
        %1643 = vmatpush1.msra.mxu0 0.0
        %1644 = vmatprep.subr.mxu0 0.0
        %1645 = vmatpush1.msra.mxu0 0.0
        %1646 = vmatprep.subr.mxu0 0.0
        %1647 = vmatpush1.msra.mxu0 0.0
        %1648 = vmatprep.subr.mxu0 0.0
        %1649 = vmatpush1.msra.mxu0 0.0
        %1650 = vmatprep.subr.mxu0 0.0
        %1651 = vmatpush1.msra.mxu0 0.0
        %1652 = vmatprep.subr.mxu0 0.0
        %1653 = vmatpush1.msra.mxu0 0.0
        %1654 = vmatprep.subr.mxu0 0.0
        %1655 = vmatpush1.msra.mxu0 0.0
        %1656 = vmatprep.subr.mxu0 0.0
        %1657 = vmatpush1.msra.mxu0 0.0
        %1658 = vmatprep.subr.mxu0 0.0
        %1659 = vmatpush1.msra.mxu0 0.0
        %1660 = vmatprep.subr.mxu0 0.0
        %1661 = vmatpush1.msra.mxu0 0.0
        %1662 = vmatprep.subr.mxu0 0.0
        %1663 = vmatpush1.msra.mxu0 0.0
        %1664 = vmatprep.subr.mxu0 0.0
        %1665 = vmatpush1.msra.mxu0 0.0
        %1666 = vmatprep.subr.mxu0 0.0
        %1667 = vmatpush1.msra.mxu0 0.0
        %1668 = vmatprep.subr.mxu0 0.0
        %1669 = vmatpush1.msra.mxu0 0.0
        %1670 = vmatprep.subr.mxu0 0.0
        %1671 = vmatpush1.msra.mxu0 0.0
        %1672 = vmatprep.subr.mxu0 0.0
        %1673 = vmatpush1.msra.mxu0 0.0
        %1674 = vmatprep.subr.mxu0 0.0
        %1675 = vmatpush1.msra.mxu0 0.0
        %1676 = vmatprep.subr.mxu0 0.0
        %1677 = vmatpush1.msra.mxu0 0.0
        %1678 = vmatprep.subr.mxu0 0.0
        %1679 = vmatpush1.msra.mxu0 0.0
        %1680 = vmatprep.subr.mxu0 0.0
        %1681 = vmatpush1.msra.mxu0 0.0
        %1682 = vmatprep.subr.mxu0 0.0
        %1683 = vmatpush1.msra.mxu0 0.0
        %1684 = vmatprep.subr.mxu0 0.0
        %1685 = vmatpush1.msra.mxu0 0.0
        %1686 = vmatprep.subr.mxu0 0.0
        %1687 = vmatpush1.msra.mxu0 0.0
        %1688 = vmatprep.mubr.f32.mxu0 0.0
        %1689 = vmatmul.mubr.f32.gmra.mrb[0].mxu0 %v1622
        %v1690 = vpop.f32.mrb[0].mxu0
        %v1691 = vadd.f32 0.0, %v1690
        %v1692 = vpop.f32.mrb[0].mxu0
        %v1693 = vadd.f32 0.0, %v1692
        %1694 = vdwg.mxu0
        %v1695 = vadd.f32 %v1610, %v1691
        %v1696 = vadd.f32 %v1611, %v1693
        %v1697 = vld [vmem:[%s5] sm:$0xff]
        %1699 = vset.pattern.permute.xlu0 0
        %1700 = vperm.xlu0 %1699, %v1697
        %v1701 = vpop.permute.xlu0 %1700
        %v1703 = vadd.f32 %v1695, %v1701
        %v1704 = vadd.f32 %v1696, %v1701
        %v1705 = vmax.f32 %v1703, 0.0
        %v1706 = vmax.f32 %v1704, 0.0
        %v1707 = vld [vmem:[%s6] sm:$0x3]
        %v1709 = vlaneseq
        %v1710 = vshrl.u32 %v1709, 7
        %v1711 = vsub.s32 0, %v1710
        %v1712 = vrot.slane %v1707, %v1711
        %v1713 = vlaneseq
        %v1714 = vshrl.u32 %v1713, 7
        %v1715 = vsub.s32 1, %v1714
        %v1716 = vrot.slane %v1707, %v1715
        %v1719 = vmul.f32 %v1705, %v1712
        %v1720 = vmul.f32 %v1706, %v1716
        %1723 = vrot.lane.b32.xlu0 %v1719, 32
        %v1724 = vpop.permute.xlu0 %1723
        %1725 = vrot.lane.b32.xlu0 %v1720, 32
        %v1726 = vpop.permute.xlu0 %1725
        %vm1727 = vcmask 261120
        %v1728 = vsel %vm1727, %v1724, %v1726
        %vm1731 = vcmask 1047808
        %1732 = vst.msk [vmem:[#allocation2] sm:$0xff] %vm1731, %v1724
        %vm1733 = vcmask 564224
        %1734 = vst.msk [vmem:[#allocation2 + $0x8] sm:$0xff] %vm1733, %v1728
        %v1735 = vld [vmem:[#allocation8] sm:$0xff]
        %v1736 = vld [vmem:[#allocation2] sm:$0xff]
        %v1737 = vld [vmem:[#allocation2 + $0x8] sm:$0xff]
        %s1738 = scalar_lea.vmem [#allocation8], 8
        %v1739 = vld [vmem:[%s1738] sm:$0xff]
        %1742 = vrot.lane.b32.xlu0 %v1736, 127
        %v1743 = vpop.permute.xlu0 %1742
        %1744 = vrot.lane.b32.xlu0 %v1737, 127
        %v1745 = vpop.permute.xlu0 %1744
        %vm1746 = vcmask 1039360
        %v1747 = vsel %vm1746, %v1743, %v1745
        %v1751 = vsel %vm557, %v1739, 0
        %1753 = vmatprep.subr.mxu0 %v1745
        %1754 = vmatpush1.msra.mxu0 %v1747
        %1755 = vmatprep.subr.mxu0 0.0
        %1756 = vmatpush1.msra.mxu0 0.0
        %1757 = vmatprep.subr.mxu0 0.0
        %1758 = vmatpush1.msra.mxu0 0.0
        %1759 = vmatprep.subr.mxu0 0.0
        %1760 = vmatpush1.msra.mxu0 0.0
        %1761 = vmatprep.subr.mxu0 0.0
        %1762 = vmatpush1.msra.mxu0 0.0
        %1763 = vmatprep.subr.mxu0 0.0
        %1764 = vmatpush1.msra.mxu0 0.0
        %1765 = vmatprep.subr.mxu0 0.0
        %1766 = vmatpush1.msra.mxu0 0.0
        %1767 = vmatprep.subr.mxu0 0.0
        %1768 = vmatpush1.msra.mxu0 0.0
        %1769 = vmatprep.subr.mxu0 0.0
        %1770 = vmatpush1.msra.mxu0 0.0
        %1771 = vmatprep.subr.mxu0 0.0
        %1772 = vmatpush1.msra.mxu0 0.0
        %1773 = vmatprep.subr.mxu0 0.0
        %1774 = vmatpush1.msra.mxu0 0.0
        %1775 = vmatprep.subr.mxu0 0.0
        %1776 = vmatpush1.msra.mxu0 0.0
        %1777 = vmatprep.subr.mxu0 0.0
        %1778 = vmatpush1.msra.mxu0 0.0
        %1779 = vmatprep.subr.mxu0 0.0
        %1780 = vmatpush1.msra.mxu0 0.0
        %1781 = vmatprep.subr.mxu0 0.0
        %1782 = vmatpush1.msra.mxu0 0.0
        %1783 = vmatprep.subr.mxu0 0.0
        %1784 = vmatpush1.msra.mxu0 0.0
        %1785 = vmatprep.subr.mxu0 0.0
        %1786 = vmatpush1.msra.mxu0 0.0
        %1787 = vmatprep.subr.mxu0 0.0
        %1788 = vmatpush1.msra.mxu0 0.0
        %1789 = vmatprep.subr.mxu0 0.0
        %1790 = vmatpush1.msra.mxu0 0.0
        %1791 = vmatprep.subr.mxu0 0.0
        %1792 = vmatpush1.msra.mxu0 0.0
        %1793 = vmatprep.subr.mxu0 0.0
        %1794 = vmatpush1.msra.mxu0 0.0
        %1795 = vmatprep.subr.mxu0 0.0
        %1796 = vmatpush1.msra.mxu0 0.0
        %1797 = vmatprep.subr.mxu0 0.0
        %1798 = vmatpush1.msra.mxu0 0.0
        %1799 = vmatprep.subr.mxu0 0.0
        %1800 = vmatpush1.msra.mxu0 0.0
        %1801 = vmatprep.subr.mxu0 0.0
        %1802 = vmatpush1.msra.mxu0 0.0
        %1803 = vmatprep.subr.mxu0 0.0
        %1804 = vmatpush1.msra.mxu0 0.0
        %1805 = vmatprep.subr.mxu0 0.0
        %1806 = vmatpush1.msra.mxu0 0.0
        %1807 = vmatprep.subr.mxu0 0.0
        %1808 = vmatpush1.msra.mxu0 0.0
        %1809 = vmatprep.subr.mxu0 0.0
        %1810 = vmatpush1.msra.mxu0 0.0
        %1811 = vmatprep.subr.mxu0 0.0
        %1812 = vmatpush1.msra.mxu0 0.0
        %1813 = vmatprep.subr.mxu0 0.0
        %1814 = vmatpush1.msra.mxu0 0.0
        %1815 = vmatprep.subr.mxu0 0.0
        %1816 = vmatpush1.msra.mxu0 0.0
        %1817 = vmatprep.mubr.f32.mxu0 0.0
        %1818 = vmatmul.mubr.f32.gmra.mrb[0].mxu0 %v1751
        %v1819 = vpop.f32.mrb[0].mxu0
        %v1820 = vadd.f32 0.0, %v1819
        %v1821 = vpop.f32.mrb[0].mxu0
        %v1822 = vadd.f32 0.0, %v1821
        %1823 = vdwg.mxu0
        %v1825 = vsel %vm557, %v1735, 0
        %1827 = vmatprep.subr.mxu0 %v1737
        %1828 = vmatpush1.msra.mxu0 %v1736
        %1829 = vmatprep.subr.mxu0 0.0
        %1830 = vmatpush1.msra.mxu0 0.0
        %1831 = vmatprep.subr.mxu0 0.0
        %1832 = vmatpush1.msra.mxu0 0.0
        %1833 = vmatprep.subr.mxu0 0.0
        %1834 = vmatpush1.msra.mxu0 0.0
        %1835 = vmatprep.subr.mxu0 0.0
        %1836 = vmatpush1.msra.mxu0 0.0
        %1837 = vmatprep.subr.mxu0 0.0
        %1838 = vmatpush1.msra.mxu0 0.0
        %1839 = vmatprep.subr.mxu0 0.0
        %1840 = vmatpush1.msra.mxu0 0.0
        %1841 = vmatprep.subr.mxu0 0.0
        %1842 = vmatpush1.msra.mxu0 0.0
        %1843 = vmatprep.subr.mxu0 0.0
        %1844 = vmatpush1.msra.mxu0 0.0
        %1845 = vmatprep.subr.mxu0 0.0
        %1846 = vmatpush1.msra.mxu0 0.0
        %1847 = vmatprep.subr.mxu0 0.0
        %1848 = vmatpush1.msra.mxu0 0.0
        %1849 = vmatprep.subr.mxu0 0.0
        %1850 = vmatpush1.msra.mxu0 0.0
        %1851 = vmatprep.subr.mxu0 0.0
        %1852 = vmatpush1.msra.mxu0 0.0
        %1853 = vmatprep.subr.mxu0 0.0
        %1854 = vmatpush1.msra.mxu0 0.0
        %1855 = vmatprep.subr.mxu0 0.0
        %1856 = vmatpush1.msra.mxu0 0.0
        %1857 = vmatprep.subr.mxu0 0.0
        %1858 = vmatpush1.msra.mxu0 0.0
        %1859 = vmatprep.subr.mxu0 0.0
        %1860 = vmatpush1.msra.mxu0 0.0
        %1861 = vmatprep.subr.mxu0 0.0
        %1862 = vmatpush1.msra.mxu0 0.0
        %1863 = vmatprep.subr.mxu0 0.0
        %1864 = vmatpush1.msra.mxu0 0.0
        %1865 = vmatprep.subr.mxu0 0.0
        %1866 = vmatpush1.msra.mxu0 0.0
        %1867 = vmatprep.subr.mxu0 0.0
        %1868 = vmatpush1.msra.mxu0 0.0
        %1869 = vmatprep.subr.mxu0 0.0
        %1870 = vmatpush1.msra.mxu0 0.0
        %1871 = vmatprep.subr.mxu0 0.0
        %1872 = vmatpush1.msra.mxu0 0.0
        %1873 = vmatprep.subr.mxu0 0.0
        %1874 = vmatpush1.msra.mxu0 0.0
        %1875 = vmatprep.subr.mxu0 0.0
        %1876 = vmatpush1.msra.mxu0 0.0
        %1877 = vmatprep.subr.mxu0 0.0
        %1878 = vmatpush1.msra.mxu0 0.0
        %1879 = vmatprep.subr.mxu0 0.0
        %1880 = vmatpush1.msra.mxu0 0.0
        %1881 = vmatprep.subr.mxu0 0.0
        %1882 = vmatpush1.msra.mxu0 0.0
        %1883 = vmatprep.subr.mxu0 0.0
        %1884 = vmatpush1.msra.mxu0 0.0
        %1885 = vmatprep.subr.mxu0 0.0
        %1886 = vmatpush1.msra.mxu0 0.0
        %1887 = vmatprep.subr.mxu0 0.0
        %1888 = vmatpush1.msra.mxu0 0.0
        %1889 = vmatprep.subr.mxu0 0.0
        %1890 = vmatpush1.msra.mxu0 0.0
        %1891 = vmatprep.mubr.f32.mxu0 0.0
        %1892 = vmatmul.mubr.f32.gmra.mrb[0].mxu0 %v1825
        %v1893 = vpop.f32.mrb[0].mxu0
        %v1894 = vadd.f32 %v1820, %v1893
        %v1895 = vpop.f32.mrb[0].mxu0
        %v1896 = vadd.f32 %v1822, %v1895
        %1897 = vdwg.mxu0
        %s1898 = scalar_lea.vmem [#allocation8], 16
        %v1899 = vld [vmem:[%s1898] sm:$0xff]
        %1900 = vrot.lane.b32.xlu0 %v1736, 126
        %v1901 = vpop.permute.xlu0 %1900
        %1902 = vrot.lane.b32.xlu0 %v1737, 126
        %v1903 = vpop.permute.xlu0 %1902
        %vm1904 = vcmask 1031168
        %v1905 = vsel %vm1904, %v1901, %v1903
        %v1909 = vsel %vm557, %v1899, 0
        %1911 = vmatprep.subr.mxu0 %v1903
        %1912 = vmatpush1.msra.mxu0 %v1905
        %1913 = vmatprep.subr.mxu0 0.0
        %1914 = vmatpush1.msra.mxu0 0.0
        %1915 = vmatprep.subr.mxu0 0.0
        %1916 = vmatpush1.msra.mxu0 0.0
        %1917 = vmatprep.subr.mxu0 0.0
        %1918 = vmatpush1.msra.mxu0 0.0
        %1919 = vmatprep.subr.mxu0 0.0
        %1920 = vmatpush1.msra.mxu0 0.0
        %1921 = vmatprep.subr.mxu0 0.0
        %1922 = vmatpush1.msra.mxu0 0.0
        %1923 = vmatprep.subr.mxu0 0.0
        %1924 = vmatpush1.msra.mxu0 0.0
        %1925 = vmatprep.subr.mxu0 0.0
        %1926 = vmatpush1.msra.mxu0 0.0
        %1927 = vmatprep.subr.mxu0 0.0
        %1928 = vmatpush1.msra.mxu0 0.0
        %1929 = vmatprep.subr.mxu0 0.0
        %1930 = vmatpush1.msra.mxu0 0.0
        %1931 = vmatprep.subr.mxu0 0.0
        %1932 = vmatpush1.msra.mxu0 0.0
        %1933 = vmatprep.subr.mxu0 0.0
        %1934 = vmatpush1.msra.mxu0 0.0
        %1935 = vmatprep.subr.mxu0 0.0
        %1936 = vmatpush1.msra.mxu0 0.0
        %1937 = vmatprep.subr.mxu0 0.0
        %1938 = vmatpush1.msra.mxu0 0.0
        %1939 = vmatprep.subr.mxu0 0.0
        %1940 = vmatpush1.msra.mxu0 0.0
        %1941 = vmatprep.subr.mxu0 0.0
        %1942 = vmatpush1.msra.mxu0 0.0
        %1943 = vmatprep.subr.mxu0 0.0
        %1944 = vmatpush1.msra.mxu0 0.0
        %1945 = vmatprep.subr.mxu0 0.0
        %1946 = vmatpush1.msra.mxu0 0.0
        %1947 = vmatprep.subr.mxu0 0.0
        %1948 = vmatpush1.msra.mxu0 0.0
        %1949 = vmatprep.subr.mxu0 0.0
        %1950 = vmatpush1.msra.mxu0 0.0
        %1951 = vmatprep.subr.mxu0 0.0
        %1952 = vmatpush1.msra.mxu0 0.0
        %1953 = vmatprep.subr.mxu0 0.0
        %1954 = vmatpush1.msra.mxu0 0.0
        %1955 = vmatprep.subr.mxu0 0.0
        %1956 = vmatpush1.msra.mxu0 0.0
        %1957 = vmatprep.subr.mxu0 0.0
        %1958 = vmatpush1.msra.mxu0 0.0
        %1959 = vmatprep.subr.mxu0 0.0
        %1960 = vmatpush1.msra.mxu0 0.0
        %1961 = vmatprep.subr.mxu0 0.0
        %1962 = vmatpush1.msra.mxu0 0.0
        %1963 = vmatprep.subr.mxu0 0.0
        %1964 = vmatpush1.msra.mxu0 0.0
        %1965 = vmatprep.subr.mxu0 0.0
        %1966 = vmatpush1.msra.mxu0 0.0
        %1967 = vmatprep.subr.mxu0 0.0
        %1968 = vmatpush1.msra.mxu0 0.0
        %1969 = vmatprep.subr.mxu0 0.0
        %1970 = vmatpush1.msra.mxu0 0.0
        %1971 = vmatprep.subr.mxu0 0.0
        %1972 = vmatpush1.msra.mxu0 0.0
        %1973 = vmatprep.subr.mxu0 0.0
        %1974 = vmatpush1.msra.mxu0 0.0
        %1975 = vmatprep.mubr.f32.mxu0 0.0
        %1976 = vmatmul.mubr.f32.gmra.mrb[0].mxu0 %v1909
        %v1977 = vpop.f32.mrb[0].mxu0
        %v1978 = vadd.f32 0.0, %v1977
        %v1979 = vpop.f32.mrb[0].mxu0
        %v1980 = vadd.f32 0.0, %v1979
        %1981 = vdwg.mxu0
        %v1982 = vadd.f32 %v1894, %v1978
        %v1983 = vadd.f32 %v1896, %v1980
        %s1984 = scalar_lea.vmem [#allocation8], 24
        %v1985 = vld [vmem:[%s1984] sm:$0xff]
        %1986 = vrot.lane.b32.xlu0 %v1736, 113
        %v1987 = vpop.permute.xlu0 %1986
        %1988 = vrot.lane.b32.xlu0 %v1737, 113
        %v1989 = vpop.permute.xlu0 %1988
        %vm1990 = vcmask 924672
        %v1991 = vsel %vm1990, %v1987, %v1989
        %v1995 = vsel %vm557, %v1985, 0
        %1997 = vmatprep.subr.mxu0 %v1989
        %1998 = vmatpush1.msra.mxu0 %v1991
        %1999 = vmatprep.subr.mxu0 0.0
        %2000 = vmatpush1.msra.mxu0 0.0
        %2001 = vmatprep.subr.mxu0 0.0
        %2002 = vmatpush1.msra.mxu0 0.0
        %2003 = vmatprep.subr.mxu0 0.0
        %2004 = vmatpush1.msra.mxu0 0.0
        %2005 = vmatprep.subr.mxu0 0.0
        %2006 = vmatpush1.msra.mxu0 0.0
        %2007 = vmatprep.subr.mxu0 0.0
        %2008 = vmatpush1.msra.mxu0 0.0
        %2009 = vmatprep.subr.mxu0 0.0
        %2010 = vmatpush1.msra.mxu0 0.0
        %2011 = vmatprep.subr.mxu0 0.0
        %2012 = vmatpush1.msra.mxu0 0.0
        %2013 = vmatprep.subr.mxu0 0.0
        %2014 = vmatpush1.msra.mxu0 0.0
        %2015 = vmatprep.subr.mxu0 0.0
        %2016 = vmatpush1.msra.mxu0 0.0
        %2017 = vmatprep.subr.mxu0 0.0
        %2018 = vmatpush1.msra.mxu0 0.0
        %2019 = vmatprep.subr.mxu0 0.0
        %2020 = vmatpush1.msra.mxu0 0.0
        %2021 = vmatprep.subr.mxu0 0.0
        %2022 = vmatpush1.msra.mxu0 0.0
        %2023 = vmatprep.subr.mxu0 0.0
        %2024 = vmatpush1.msra.mxu0 0.0
        %2025 = vmatprep.subr.mxu0 0.0
        %2026 = vmatpush1.msra.mxu0 0.0
        %2027 = vmatprep.subr.mxu0 0.0
        %2028 = vmatpush1.msra.mxu0 0.0
        %2029 = vmatprep.subr.mxu0 0.0
        %2030 = vmatpush1.msra.mxu0 0.0
        %2031 = vmatprep.subr.mxu0 0.0
        %2032 = vmatpush1.msra.mxu0 0.0
        %2033 = vmatprep.subr.mxu0 0.0
        %2034 = vmatpush1.msra.mxu0 0.0
        %2035 = vmatprep.subr.mxu0 0.0
        %2036 = vmatpush1.msra.mxu0 0.0
        %2037 = vmatprep.subr.mxu0 0.0
        %2038 = vmatpush1.msra.mxu0 0.0
        %2039 = vmatprep.subr.mxu0 0.0
        %2040 = vmatpush1.msra.mxu0 0.0
        %2041 = vmatprep.subr.mxu0 0.0
        %2042 = vmatpush1.msra.mxu0 0.0
        %2043 = vmatprep.subr.mxu0 0.0
        %2044 = vmatpush1.msra.mxu0 0.0
        %2045 = vmatprep.subr.mxu0 0.0
        %2046 = vmatpush1.msra.mxu0 0.0
        %2047 = vmatprep.subr.mxu0 0.0
        %2048 = vmatpush1.msra.mxu0 0.0
        %2049 = vmatprep.subr.mxu0 0.0
        %2050 = vmatpush1.msra.mxu0 0.0
        %2051 = vmatprep.subr.mxu0 0.0
        %2052 = vmatpush1.msra.mxu0 0.0
        %2053 = vmatprep.subr.mxu0 0.0
        %2054 = vmatpush1.msra.mxu0 0.0
        %2055 = vmatprep.subr.mxu0 0.0
        %2056 = vmatpush1.msra.mxu0 0.0
        %2057 = vmatprep.subr.mxu0 0.0
        %2058 = vmatpush1.msra.mxu0 0.0
        %2059 = vmatprep.subr.mxu0 0.0
        %2060 = vmatpush1.msra.mxu0 0.0
        %2061 = vmatprep.mubr.f32.mxu0 0.0
        %2062 = vmatmul.mubr.f32.gmra.mrb[0].mxu0 %v1995
        %v2063 = vpop.f32.mrb[0].mxu0
        %v2064 = vadd.f32 0.0, %v2063
        %v2065 = vpop.f32.mrb[0].mxu0
        %v2066 = vadd.f32 0.0, %v2065
        %2067 = vdwg.mxu0
        %v2068 = vadd.f32 %v1982, %v2064
        %v2069 = vadd.f32 %v1983, %v2066
        %s2070 = scalar_lea.vmem [#allocation8], 32
        %v2071 = vld [vmem:[%s2070] sm:$0xff]
        %2072 = vrot.lane.b32.xlu0 %v1736, 112
        %v2073 = vpop.permute.xlu0 %2072
        %2074 = vrot.lane.b32.xlu0 %v1737, 112
        %v2075 = vpop.permute.xlu0 %2074
        %v2076 = vsel %vm381, %v2073, %v2075
        %v2080 = vsel %vm557, %v2071, 0
        %2082 = vmatprep.subr.mxu0 %v2075
        %2083 = vmatpush1.msra.mxu0 %v2076
        %2084 = vmatprep.subr.mxu0 0.0
        %2085 = vmatpush1.msra.mxu0 0.0
        %2086 = vmatprep.subr.mxu0 0.0
        %2087 = vmatpush1.msra.mxu0 0.0
        %2088 = vmatprep.subr.mxu0 0.0
        %2089 = vmatpush1.msra.mxu0 0.0
        %2090 = vmatprep.subr.mxu0 0.0
        %2091 = vmatpush1.msra.mxu0 0.0
        %2092 = vmatprep.subr.mxu0 0.0
        %2093 = vmatpush1.msra.mxu0 0.0
        %2094 = vmatprep.subr.mxu0 0.0
        %2095 = vmatpush1.msra.mxu0 0.0
        %2096 = vmatprep.subr.mxu0 0.0
        %2097 = vmatpush1.msra.mxu0 0.0
        %2098 = vmatprep.subr.mxu0 0.0
        %2099 = vmatpush1.msra.mxu0 0.0
        %2100 = vmatprep.subr.mxu0 0.0
        %2101 = vmatpush1.msra.mxu0 0.0
        %2102 = vmatprep.subr.mxu0 0.0
        %2103 = vmatpush1.msra.mxu0 0.0
        %2104 = vmatprep.subr.mxu0 0.0
        %2105 = vmatpush1.msra.mxu0 0.0
        %2106 = vmatprep.subr.mxu0 0.0
        %2107 = vmatpush1.msra.mxu0 0.0
        %2108 = vmatprep.subr.mxu0 0.0
        %2109 = vmatpush1.msra.mxu0 0.0
        %2110 = vmatprep.subr.mxu0 0.0
        %2111 = vmatpush1.msra.mxu0 0.0
        %2112 = vmatprep.subr.mxu0 0.0
        %2113 = vmatpush1.msra.mxu0 0.0
        %2114 = vmatprep.subr.mxu0 0.0
        %2115 = vmatpush1.msra.mxu0 0.0
        %2116 = vmatprep.subr.mxu0 0.0
        %2117 = vmatpush1.msra.mxu0 0.0
        %2118 = vmatprep.subr.mxu0 0.0
        %2119 = vmatpush1.msra.mxu0 0.0
        %2120 = vmatprep.subr.mxu0 0.0
        %2121 = vmatpush1.msra.mxu0 0.0
        %2122 = vmatprep.subr.mxu0 0.0
        %2123 = vmatpush1.msra.mxu0 0.0
        %2124 = vmatprep.subr.mxu0 0.0
        %2125 = vmatpush1.msra.mxu0 0.0
        %2126 = vmatprep.subr.mxu0 0.0
        %2127 = vmatpush1.msra.mxu0 0.0
        %2128 = vmatprep.subr.mxu0 0.0
        %2129 = vmatpush1.msra.mxu0 0.0
        %2130 = vmatprep.subr.mxu0 0.0
        %2131 = vmatpush1.msra.mxu0 0.0
        %2132 = vmatprep.subr.mxu0 0.0
        %2133 = vmatpush1.msra.mxu0 0.0
        %2134 = vmatprep.subr.mxu0 0.0
        %2135 = vmatpush1.msra.mxu0 0.0
        %2136 = vmatprep.subr.mxu0 0.0
        %2137 = vmatpush1.msra.mxu0 0.0
        %2138 = vmatprep.subr.mxu0 0.0
        %2139 = vmatpush1.msra.mxu0 0.0
        %2140 = vmatprep.subr.mxu0 0.0
        %2141 = vmatpush1.msra.mxu0 0.0
        %2142 = vmatprep.subr.mxu0 0.0
        %2143 = vmatpush1.msra.mxu0 0.0
        %2144 = vmatprep.subr.mxu0 0.0
        %2145 = vmatpush1.msra.mxu0 0.0
        %2146 = vmatprep.mubr.f32.mxu0 0.0
        %2147 = vmatmul.mubr.f32.gmra.mrb[0].mxu0 %v2080
        %v2148 = vpop.f32.mrb[0].mxu0
        %v2149 = vadd.f32 0.0, %v2148
        %v2150 = vpop.f32.mrb[0].mxu0
        %v2151 = vadd.f32 0.0, %v2150
        %2152 = vdwg.mxu0
        %v2153 = vadd.f32 %v2068, %v2149
        %v2154 = vadd.f32 %v2069, %v2151
        %s2155 = scalar_lea.vmem [#allocation8], 40
        %v2156 = vld [vmem:[%s2155] sm:$0xff]
        %2157 = vrot.lane.b32.xlu0 %v1736, 111
        %v2158 = vpop.permute.xlu0 %2157
        %2159 = vrot.lane.b32.xlu0 %v1737, 111
        %v2160 = vpop.permute.xlu0 %2159
        %vm2161 = vcmask 908288
        %v2162 = vsel %vm2161, %v2158, %v2160
        %v2166 = vsel %vm557, %v2156, 0
        %2168 = vmatprep.subr.mxu0 %v2160
        %2169 = vmatpush1.msra.mxu0 %v2162
        %2170 = vmatprep.subr.mxu0 0.0
        %2171 = vmatpush1.msra.mxu0 0.0
        %2172 = vmatprep.subr.mxu0 0.0
        %2173 = vmatpush1.msra.mxu0 0.0
        %2174 = vmatprep.subr.mxu0 0.0
        %2175 = vmatpush1.msra.mxu0 0.0
        %2176 = vmatprep.subr.mxu0 0.0
        %2177 = vmatpush1.msra.mxu0 0.0
        %2178 = vmatprep.subr.mxu0 0.0
        %2179 = vmatpush1.msra.mxu0 0.0
        %2180 = vmatprep.subr.mxu0 0.0
        %2181 = vmatpush1.msra.mxu0 0.0
        %2182 = vmatprep.subr.mxu0 0.0
        %2183 = vmatpush1.msra.mxu0 0.0
        %2184 = vmatprep.subr.mxu0 0.0
        %2185 = vmatpush1.msra.mxu0 0.0
        %2186 = vmatprep.subr.mxu0 0.0
        %2187 = vmatpush1.msra.mxu0 0.0
        %2188 = vmatprep.subr.mxu0 0.0
        %2189 = vmatpush1.msra.mxu0 0.0
        %2190 = vmatprep.subr.mxu0 0.0
        %2191 = vmatpush1.msra.mxu0 0.0
        %2192 = vmatprep.subr.mxu0 0.0
        %2193 = vmatpush1.msra.mxu0 0.0
        %2194 = vmatprep.subr.mxu0 0.0
        %2195 = vmatpush1.msra.mxu0 0.0
        %2196 = vmatprep.subr.mxu0 0.0
        %2197 = vmatpush1.msra.mxu0 0.0
        %2198 = vmatprep.subr.mxu0 0.0
        %2199 = vmatpush1.msra.mxu0 0.0
        %2200 = vmatprep.subr.mxu0 0.0
        %2201 = vmatpush1.msra.mxu0 0.0
        %2202 = vmatprep.subr.mxu0 0.0
        %2203 = vmatpush1.msra.mxu0 0.0
        %2204 = vmatprep.subr.mxu0 0.0
        %2205 = vmatpush1.msra.mxu0 0.0
        %2206 = vmatprep.subr.mxu0 0.0
        %2207 = vmatpush1.msra.mxu0 0.0
        %2208 = vmatprep.subr.mxu0 0.0
        %2209 = vmatpush1.msra.mxu0 0.0
        %2210 = vmatprep.subr.mxu0 0.0
        %2211 = vmatpush1.msra.mxu0 0.0
        %2212 = vmatprep.subr.mxu0 0.0
        %2213 = vmatpush1.msra.mxu0 0.0
        %2214 = vmatprep.subr.mxu0 0.0
        %2215 = vmatpush1.msra.mxu0 0.0
        %2216 = vmatprep.subr.mxu0 0.0
        %2217 = vmatpush1.msra.mxu0 0.0
        %2218 = vmatprep.subr.mxu0 0.0
        %2219 = vmatpush1.msra.mxu0 0.0
        %2220 = vmatprep.subr.mxu0 0.0
        %2221 = vmatpush1.msra.mxu0 0.0
        %2222 = vmatprep.subr.mxu0 0.0
        %2223 = vmatpush1.msra.mxu0 0.0
        %2224 = vmatprep.subr.mxu0 0.0
        %2225 = vmatpush1.msra.mxu0 0.0
        %2226 = vmatprep.subr.mxu0 0.0
        %2227 = vmatpush1.msra.mxu0 0.0
        %2228 = vmatprep.subr.mxu0 0.0
        %2229 = vmatpush1.msra.mxu0 0.0
        %2230 = vmatprep.subr.mxu0 0.0
        %2231 = vmatpush1.msra.mxu0 0.0
        %2232 = vmatprep.mubr.f32.mxu0 0.0
        %2233 = vmatmul.mubr.f32.gmra.mrb[0].mxu0 %v2166
        %v2234 = vpop.f32.mrb[0].mxu0
        %v2235 = vadd.f32 0.0, %v2234
        %v2236 = vpop.f32.mrb[0].mxu0
        %v2237 = vadd.f32 0.0, %v2236
        %2238 = vdwg.mxu0
        %v2239 = vadd.f32 %v2153, %v2235
        %v2240 = vadd.f32 %v2154, %v2237
        %s2241 = scalar_lea.vmem [#allocation8], 48
        %v2242 = vld [vmem:[%s2241] sm:$0xff]
        %2243 = vrot.lane.b32.xlu0 %v1736, 98
        %v2244 = vpop.permute.xlu0 %2243
        %2245 = vrot.lane.b32.xlu0 %v1737, 98
        %v2246 = vpop.permute.xlu0 %2245
        %vm2247 = vcmask 801792
        %v2248 = vsel %vm2247, %v2244, %v2246
        %v2252 = vsel %vm557, %v2242, 0
        %2254 = vmatprep.subr.mxu0 %v2246
        %2255 = vmatpush1.msra.mxu0 %v2248
        %2256 = vmatprep.subr.mxu0 0.0
        %2257 = vmatpush1.msra.mxu0 0.0
        %2258 = vmatprep.subr.mxu0 0.0
        %2259 = vmatpush1.msra.mxu0 0.0
        %2260 = vmatprep.subr.mxu0 0.0
        %2261 = vmatpush1.msra.mxu0 0.0
        %2262 = vmatprep.subr.mxu0 0.0
        %2263 = vmatpush1.msra.mxu0 0.0
        %2264 = vmatprep.subr.mxu0 0.0
        %2265 = vmatpush1.msra.mxu0 0.0
        %2266 = vmatprep.subr.mxu0 0.0
        %2267 = vmatpush1.msra.mxu0 0.0
        %2268 = vmatprep.subr.mxu0 0.0
        %2269 = vmatpush1.msra.mxu0 0.0
        %2270 = vmatprep.subr.mxu0 0.0
        %2271 = vmatpush1.msra.mxu0 0.0
        %2272 = vmatprep.subr.mxu0 0.0
        %2273 = vmatpush1.msra.mxu0 0.0
        %2274 = vmatprep.subr.mxu0 0.0
        %2275 = vmatpush1.msra.mxu0 0.0
        %2276 = vmatprep.subr.mxu0 0.0
        %2277 = vmatpush1.msra.mxu0 0.0
        %2278 = vmatprep.subr.mxu0 0.0
        %2279 = vmatpush1.msra.mxu0 0.0
        %2280 = vmatprep.subr.mxu0 0.0
        %2281 = vmatpush1.msra.mxu0 0.0
        %2282 = vmatprep.subr.mxu0 0.0
        %2283 = vmatpush1.msra.mxu0 0.0
        %2284 = vmatprep.subr.mxu0 0.0
        %2285 = vmatpush1.msra.mxu0 0.0
        %2286 = vmatprep.subr.mxu0 0.0
        %2287 = vmatpush1.msra.mxu0 0.0
        %2288 = vmatprep.subr.mxu0 0.0
        %2289 = vmatpush1.msra.mxu0 0.0
        %2290 = vmatprep.subr.mxu0 0.0
        %2291 = vmatpush1.msra.mxu0 0.0
        %2292 = vmatprep.subr.mxu0 0.0
        %2293 = vmatpush1.msra.mxu0 0.0
        %2294 = vmatprep.subr.mxu0 0.0
        %2295 = vmatpush1.msra.mxu0 0.0
        %2296 = vmatprep.subr.mxu0 0.0
        %2297 = vmatpush1.msra.mxu0 0.0
        %2298 = vmatprep.subr.mxu0 0.0
        %2299 = vmatpush1.msra.mxu0 0.0
        %2300 = vmatprep.subr.mxu0 0.0
        %2301 = vmatpush1.msra.mxu0 0.0
        %2302 = vmatprep.subr.mxu0 0.0
        %2303 = vmatpush1.msra.mxu0 0.0
        %2304 = vmatprep.subr.mxu0 0.0
        %2305 = vmatpush1.msra.mxu0 0.0
        %2306 = vmatprep.subr.mxu0 0.0
        %2307 = vmatpush1.msra.mxu0 0.0
        %2308 = vmatprep.subr.mxu0 0.0
        %2309 = vmatpush1.msra.mxu0 0.0
        %2310 = vmatprep.subr.mxu0 0.0
        %2311 = vmatpush1.msra.mxu0 0.0
        %2312 = vmatprep.subr.mxu0 0.0
        %2313 = vmatpush1.msra.mxu0 0.0
        %2314 = vmatprep.subr.mxu0 0.0
        %2315 = vmatpush1.msra.mxu0 0.0
        %2316 = vmatprep.subr.mxu0 0.0
        %2317 = vmatpush1.msra.mxu0 0.0
        %2318 = vmatprep.mubr.f32.mxu0 0.0
        %2319 = vmatmul.mubr.f32.gmra.mrb[0].mxu0 %v2252
        %v2320 = vpop.f32.mrb[0].mxu0
        %v2321 = vadd.f32 0.0, %v2320
        %v2322 = vpop.f32.mrb[0].mxu0
        %v2323 = vadd.f32 0.0, %v2322
        %2324 = vdwg.mxu0
        %v2325 = vadd.f32 %v2239, %v2321
        %v2326 = vadd.f32 %v2240, %v2323
        %s2327 = scalar_lea.vmem [#allocation8], 56
        %v2328 = vld [vmem:[%s2327] sm:$0xff]
        %2329 = vrot.lane.b32.xlu0 %v1736, 97
        %v2330 = vpop.permute.xlu0 %2329
        %2331 = vrot.lane.b32.xlu0 %v1737, 97
        %v2332 = vpop.permute.xlu0 %2331
        %vm2333 = vcmask 793600
        %v2334 = vsel %vm2333, %v2330, %v2332
        %v2338 = vsel %vm557, %v2328, 0
        %2340 = vmatprep.subr.mxu0 %v2332
        %2341 = vmatpush1.msra.mxu0 %v2334
        %2342 = vmatprep.subr.mxu0 0.0
        %2343 = vmatpush1.msra.mxu0 0.0
        %2344 = vmatprep.subr.mxu0 0.0
        %2345 = vmatpush1.msra.mxu0 0.0
        %2346 = vmatprep.subr.mxu0 0.0
        %2347 = vmatpush1.msra.mxu0 0.0
        %2348 = vmatprep.subr.mxu0 0.0
        %2349 = vmatpush1.msra.mxu0 0.0
        %2350 = vmatprep.subr.mxu0 0.0
        %2351 = vmatpush1.msra.mxu0 0.0
        %2352 = vmatprep.subr.mxu0 0.0
        %2353 = vmatpush1.msra.mxu0 0.0
        %2354 = vmatprep.subr.mxu0 0.0
        %2355 = vmatpush1.msra.mxu0 0.0
        %2356 = vmatprep.subr.mxu0 0.0
        %2357 = vmatpush1.msra.mxu0 0.0
        %2358 = vmatprep.subr.mxu0 0.0
        %2359 = vmatpush1.msra.mxu0 0.0
        %2360 = vmatprep.subr.mxu0 0.0
        %2361 = vmatpush1.msra.mxu0 0.0
        %2362 = vmatprep.subr.mxu0 0.0
        %2363 = vmatpush1.msra.mxu0 0.0
        %2364 = vmatprep.subr.mxu0 0.0
        %2365 = vmatpush1.msra.mxu0 0.0
        %2366 = vmatprep.subr.mxu0 0.0
        %2367 = vmatpush1.msra.mxu0 0.0
        %2368 = vmatprep.subr.mxu0 0.0
        %2369 = vmatpush1.msra.mxu0 0.0
        %2370 = vmatprep.subr.mxu0 0.0
        %2371 = vmatpush1.msra.mxu0 0.0
        %2372 = vmatprep.subr.mxu0 0.0
        %2373 = vmatpush1.msra.mxu0 0.0
        %2374 = vmatprep.subr.mxu0 0.0
        %2375 = vmatpush1.msra.mxu0 0.0
        %2376 = vmatprep.subr.mxu0 0.0
        %2377 = vmatpush1.msra.mxu0 0.0
        %2378 = vmatprep.subr.mxu0 0.0
        %2379 = vmatpush1.msra.mxu0 0.0
        %2380 = vmatprep.subr.mxu0 0.0
        %2381 = vmatpush1.msra.mxu0 0.0
        %2382 = vmatprep.subr.mxu0 0.0
        %2383 = vmatpush1.msra.mxu0 0.0
        %2384 = vmatprep.subr.mxu0 0.0
        %2385 = vmatpush1.msra.mxu0 0.0
        %2386 = vmatprep.subr.mxu0 0.0
        %2387 = vmatpush1.msra.mxu0 0.0
        %2388 = vmatprep.subr.mxu0 0.0
        %2389 = vmatpush1.msra.mxu0 0.0
        %2390 = vmatprep.subr.mxu0 0.0
        %2391 = vmatpush1.msra.mxu0 0.0
        %2392 = vmatprep.subr.mxu0 0.0
        %2393 = vmatpush1.msra.mxu0 0.0
        %2394 = vmatprep.subr.mxu0 0.0
        %2395 = vmatpush1.msra.mxu0 0.0
        %2396 = vmatprep.subr.mxu0 0.0
        %2397 = vmatpush1.msra.mxu0 0.0
        %2398 = vmatprep.subr.mxu0 0.0
        %2399 = vmatpush1.msra.mxu0 0.0
        %2400 = vmatprep.subr.mxu0 0.0
        %2401 = vmatpush1.msra.mxu0 0.0
        %2402 = vmatprep.subr.mxu0 0.0
        %2403 = vmatpush1.msra.mxu0 0.0
        %2404 = vmatprep.mubr.f32.mxu0 0.0
        %2405 = vmatmul.mubr.f32.gmra.mrb[0].mxu0 %v2338
        %v2406 = vpop.f32.mrb[0].mxu0
        %v2407 = vadd.f32 0.0, %v2406
        %v2408 = vpop.f32.mrb[0].mxu0
        %v2409 = vadd.f32 0.0, %v2408
        %2410 = vdwg.mxu0
        %v2411 = vadd.f32 %v2325, %v2407
        %v2412 = vadd.f32 %v2326, %v2409
        %s2413 = scalar_lea.vmem [#allocation8], 64
        %v2414 = vld [vmem:[%s2413] sm:$0xff]
        %2415 = vrot.lane.b32.xlu0 %v1736, 96
        %v2416 = vpop.permute.xlu0 %2415
        %2417 = vrot.lane.b32.xlu0 %v1737, 96
        %v2418 = vpop.permute.xlu0 %2417
        %v2419 = vsel %vm1018, %v2416, %v2418
        %v2423 = vsel %vm557, %v2414, 0
        %2425 = vmatprep.subr.mxu0 %v2418
        %2426 = vmatpush1.msra.mxu0 %v2419
        %2427 = vmatprep.subr.mxu0 0.0
        %2428 = vmatpush1.msra.mxu0 0.0
        %2429 = vmatprep.subr.mxu0 0.0
        %2430 = vmatpush1.msra.mxu0 0.0
        %2431 = vmatprep.subr.mxu0 0.0
        %2432 = vmatpush1.msra.mxu0 0.0
        %2433 = vmatprep.subr.mxu0 0.0
        %2434 = vmatpush1.msra.mxu0 0.0
        %2435 = vmatprep.subr.mxu0 0.0
        %2436 = vmatpush1.msra.mxu0 0.0
        %2437 = vmatprep.subr.mxu0 0.0
        %2438 = vmatpush1.msra.mxu0 0.0
        %2439 = vmatprep.subr.mxu0 0.0
        %2440 = vmatpush1.msra.mxu0 0.0
        %2441 = vmatprep.subr.mxu0 0.0
        %2442 = vmatpush1.msra.mxu0 0.0
        %2443 = vmatprep.subr.mxu0 0.0
        %2444 = vmatpush1.msra.mxu0 0.0
        %2445 = vmatprep.subr.mxu0 0.0
        %2446 = vmatpush1.msra.mxu0 0.0
        %2447 = vmatprep.subr.mxu0 0.0
        %2448 = vmatpush1.msra.mxu0 0.0
        %2449 = vmatprep.subr.mxu0 0.0
        %2450 = vmatpush1.msra.mxu0 0.0
        %2451 = vmatprep.subr.mxu0 0.0
        %2452 = vmatpush1.msra.mxu0 0.0
        %2453 = vmatprep.subr.mxu0 0.0
        %2454 = vmatpush1.msra.mxu0 0.0
        %2455 = vmatprep.subr.mxu0 0.0
        %2456 = vmatpush1.msra.mxu0 0.0
        %2457 = vmatprep.subr.mxu0 0.0
        %2458 = vmatpush1.msra.mxu0 0.0
        %2459 = vmatprep.subr.mxu0 0.0
        %2460 = vmatpush1.msra.mxu0 0.0
        %2461 = vmatprep.subr.mxu0 0.0
        %2462 = vmatpush1.msra.mxu0 0.0
        %2463 = vmatprep.subr.mxu0 0.0
        %2464 = vmatpush1.msra.mxu0 0.0
        %2465 = vmatprep.subr.mxu0 0.0
        %2466 = vmatpush1.msra.mxu0 0.0
        %2467 = vmatprep.subr.mxu0 0.0
        %2468 = vmatpush1.msra.mxu0 0.0
        %2469 = vmatprep.subr.mxu0 0.0
        %2470 = vmatpush1.msra.mxu0 0.0
        %2471 = vmatprep.subr.mxu0 0.0
        %2472 = vmatpush1.msra.mxu0 0.0
        %2473 = vmatprep.subr.mxu0 0.0
        %2474 = vmatpush1.msra.mxu0 0.0
        %2475 = vmatprep.subr.mxu0 0.0
        %2476 = vmatpush1.msra.mxu0 0.0
        %2477 = vmatprep.subr.mxu0 0.0
        %2478 = vmatpush1.msra.mxu0 0.0
        %2479 = vmatprep.subr.mxu0 0.0
        %2480 = vmatpush1.msra.mxu0 0.0
        %2481 = vmatprep.subr.mxu0 0.0
        %2482 = vmatpush1.msra.mxu0 0.0
        %2483 = vmatprep.subr.mxu0 0.0
        %2484 = vmatpush1.msra.mxu0 0.0
        %2485 = vmatprep.subr.mxu0 0.0
        %2486 = vmatpush1.msra.mxu0 0.0
        %2487 = vmatprep.subr.mxu0 0.0
        %2488 = vmatpush1.msra.mxu0 0.0
        %2489 = vmatprep.mubr.f32.mxu0 0.0
        %2490 = vmatmul.mubr.f32.gmra.mrb[0].mxu0 %v2423
        %v2491 = vpop.f32.mrb[0].mxu0
        %v2492 = vadd.f32 0.0, %v2491
        %v2493 = vpop.f32.mrb[0].mxu0
        %v2494 = vadd.f32 0.0, %v2493
        %2495 = vdwg.mxu0
        %v2496 = vadd.f32 %v2411, %v2492
        %v2497 = vadd.f32 %v2412, %v2494
        %v2498 = vld [vmem:[%s8] sm:$0xff]
        %2500 = vset.pattern.permute.xlu0 0
        %2501 = vperm.xlu0 %2500, %v2498
        %v2502 = vpop.permute.xlu0 %2501
        %v2504 = vadd.f32 %v2496, %v2502
        %v2505 = vadd.f32 %v2497, %v2502
        %v2508 = vcombine.low %v2504, %v2505
        %v2510 = vunpack.c.l.s4 1966171168
        %v2511 = vunpack.c.0.s8 %v2510
        %v2512 = vlaneseq
        %v2513 = vshrl.u32 %v2512, 7
        %v2514 = vsub.s32 %v2511, %v2513
        %v2515 = vrot.slane %v2508, %v2514
        %v2517 = vunpack.c.l.s4 1966171168
        %v2518 = vunpack.c.0.s8 %v2517
        %v2519 = vlaneseq
        %v2520 = vshrl.u32 %v2519, 7
        %v2521 = vsub.s32 %v2518, %v2520
        %v2522 = vrot.slane %v2515, %v2521
        %v2524 = vlaneseq
        %vm2525 = vcmp.ge.s32.totalorder %v2524, 0
        %vm2526 = vcmp.lt.s32.totalorder %v2524, 195
        %vm2527 = vmand %vm2525, %vm2526
        %2528 = vst.msk [vmem:[%s379] sm:$0x3] %vm2527, %v2522
        %p2529 = scmp.lt.s32.totalorder %s24, 1
        %s2530 = scalar_select %p2529, %s24, 1
        %s2531 = smul.addr %s2530, 2
        %s2532 = scalar_lea.vmem %s9, %s2531
        // Predicated region
        $region69: #{deconv_layer_pallas.1} parent=55 // pred_check
          %p2533 = pneg %p236
        $region70: #{deconv_layer_pallas.1} parent=55 // pred_check_branch
          %2535 = sbr.rel (%p2533) target = $region72
        $region71: #{deconv_layer_pallas.1} parent=55 // pred_region
          _
        $region72: #{deconv_layer_pallas.1} parent=55 // pred_fallthru
          _
      $region56: #{deconv_layer_pallas.1} parent=5 // pred_fallthru
        _
      %p2536 = scmp.le.s32.totalorder 2, %s19
      // Predicated region
      $region73: #{deconv_layer_pallas.1} parent=5 // pred_check
        %p2537 = pneg %p2536
      $region74: #{deconv_layer_pallas.1} parent=5 // pred_check_branch
        %2539 = sbr.rel (%p2537) target = $region76
      $region75: #{deconv_layer_pallas.1} parent=5 // pred_region
        %s2540 = ssub.s32 %s19, 2
        // Predicated region
        $region77: #{deconv_layer_pallas.1} parent=75 // pred_check
          %p2541 = pneg %p242
        $region78: #{deconv_layer_pallas.1} parent=75 // pred_check_branch
          %2543 = sbr.rel (%p2541) target = $region80
        $region79: #{deconv_layer_pallas.1} parent=75 // pred_region
          %p2544 = scmp.lt.s32.totalorder %s25, 1
          %s2545 = scalar_select %p2544, %s25, 1
          %s2546 = smul.addr %s2545, 2
          %s2547 = scalar_lea.vmem %s9, %s2546
        $region80: #{deconv_layer_pallas.1} parent=75 // pred_fallthru
          _
      $region76: #{deconv_layer_pallas.1} parent=5 // pred_fallthru
        _
    $region6: #{deconv_layer_pallas.1} parent=1 // loop_footer
      %s23 = sadd.s32 1, %s19
    $region7: #{deconv_layer_pallas.1} parent=1 // loop_footer_branch
      %18 = sbr.rel target = $region3
    $region8: #{deconv_layer_pallas.1} parent=1 // loop_exit
      _
    %2548 = vsyncpa [#allocation5], 1
    %s2549 = scalar_lea.sflag [#allocation5], 1
    %2550 = vsyncpa %s2549, 1
    %2551 = vsyncpa [#allocation7], 1

</llo_original>
